<compile_context>
chip_gen: v7x
topology: tpu7x:2x2x1
jax: 0.10.0
libtpu: 0.0.40
codegen_flags: <defaults>
</compile_context>

<pallas_src>
import jax
import jax.numpy as jnp
from jax.experimental import pallas as pl
from jax.experimental.pallas import tpu as pltpu

LANE = 128  # TPU lane width; all feature dims are padded to a multiple of this.


def _round_up(x, m):
    return (x + m - 1) // m * m


def _pad2d(x, rows, cols):
    return jnp.pad(x, ((0, rows - x.shape[0]), (0, cols - x.shape[1])))


def sage_layer_kernel(occ_ref, a_ref, hsrc_ref, hdst_ref, w_ref, b_ref,
                      o_ref, acc_ref):
    """One SAGEConv('mean') layer fused with ReLU, tiled over (dst rows, src blocks).

    occ_ref : SMEM [n_row_blocks * n_src_blocks] int32 block-occupancy bitmap
    a_ref   : [tm, tk]          bf16 tile of the row-normalized adjacency
    hsrc_ref: [tk, Fin_p]       bf16 source-node feature tile (varies with k)
    hdst_ref: [tm, Fin_p]       bf16 destination-node feature tile (varies with i)
    w_ref   : [2*Fin_p, Fout_p] bf16 stacked weights [W_self; W_neigh]
    b_ref   : [1, Fout_p]       f32 bias
    o_ref   : [tm, Fout_p]      relu(H @ Ws + (A @ H) @ Wn + b)
    acc_ref : [tm, Fin_p]       f32 VMEM accumulator for A @ H
    """
    i = pl.program_id(0)
    k = pl.program_id(1)
    nk = pl.num_programs(1)

    @pl.when(k == 0)
    def _init():
        acc_ref[...] = jnp.zeros_like(acc_ref)

    # Skip MXU work for adjacency tiles that are entirely zero.
    @pl.when(occ_ref[i * nk + k] != 0)
    def _aggregate():
        acc_ref[...] += jnp.dot(a_ref[...], hsrc_ref[...],
                                preferred_element_type=jnp.float32)

    @pl.when(k == nk - 1)
    def _finalize():
        # Fused feature transform: [H_dst | neigh] @ [Ws; Wn]  (one bf16 MXU pass).
        feats = jnp.concatenate(
            [hdst_ref[...], acc_ref[...].astype(jnp.bfloat16)], axis=-1)
        out = jnp.dot(feats, w_ref[...],
                      preferred_element_type=jnp.float32) + b_ref[...]
        o_ref[...] = jnp.maximum(out, 0.0).astype(o_ref.dtype)


def sage_layer(a, h, w_stack, b, occ, *, tm=128, tk=128,
               out_dtype=jnp.float32):
    """relu(H @ Ws + (A @ H) @ Wn + b) for padded, lane-dense operands."""
    n_p = a.shape[0]
    f_in_p = h.shape[1]
    f_out_p = w_stack.shape[1]
    grid = (n_p // tm, n_p // tk)

    flops = 2 * n_p * n_p * f_in_p + 2 * n_p * (2 * f_in_p) * f_out_p
    bytes_accessed = (a.size * a.dtype.itemsize
                      + 2 * h.size * h.dtype.itemsize
                      + w_stack.size * w_stack.dtype.itemsize
                      + b.size * b.dtype.itemsize
                      + n_p * f_out_p * jnp.dtype(out_dtype).itemsize)

    return pl.pallas_call(
        sage_layer_kernel,
        out_shape=jax.ShapeDtypeStruct((n_p, f_out_p), out_dtype),
        grid_spec=pltpu.PrefetchScalarGridSpec(
            num_scalar_prefetch=1,
            grid=grid,
            in_specs=[
                # adjacency tile (i, k)
                pl.BlockSpec((tm, tk), lambda i, k, occ_ref: (i, k)),
                # source-node features (k, 0)
                pl.BlockSpec((tk, f_in_p), lambda i, k, occ_ref: (k, 0)),
                # destination-node (self) features (i, 0) — resident across k
                pl.BlockSpec((tm, f_in_p), lambda i, k, occ_ref: (i, 0)),
                # stacked weights / bias — constant block, resident across grid
                pl.BlockSpec((2 * f_in_p, f_out_p), lambda i, k, occ_ref: (0, 0)),
                pl.BlockSpec((1, f_out_p), lambda i, k, occ_ref: (0, 0)),
            ],
            out_specs=pl.BlockSpec((tm, f_out_p), lambda i, k, occ_ref: (i, 0)),
            scratch_shapes=[pltpu.VMEM((tm, f_in_p), jnp.float32)],
        ),
        compiler_params=pltpu.CompilerParams(
            dimension_semantics=("parallel", "arbitrary"),
            vmem_limit_bytes=48 * 1024 * 1024,  # headroom even on v7x (64 MiB VMEM)
        ),
        cost_estimate=pl.CostEstimate(flops=flops, transcendentals=0,
                                      bytes_accessed=bytes_accessed),
    )(occ, a, h, h, w_stack, b)


def block_occupancy(a, tm, tk):
    """int32 bitmap: 1 iff the (tm, tk) adjacency block has any nonzero."""
    n = a.shape[0]
    nb_i, nb_k = n // tm, n // tk
    occ = a.reshape(nb_i, tm, nb_k, tk).sum(axis=(1, 3)) > 0
    return occ.astype(jnp.int32).reshape(-1)


def graphsage_forward(a, occ, x, w1, b1, w2, b2):
    # h = relu(conv1(g, x)); h = relu(conv2(g, h))   (padded, lane-dense)
    h1 = sage_layer(a, x, w1, b1, occ, out_dtype=jnp.bfloat16)
    return sage_layer(a, h1, w2, b2, occ, out_dtype=jnp.float32)


def init_params(key, in_feats, hidden_size, h_feats):
    ks = jax.random.split(key, 4)

    def xavier(k, fan_in, fan_out):
        limit = (6.0 / (fan_in + fan_out)) ** 0.5
        return jax.random.uniform(k, (fan_in, fan_out), jnp.float32, -limit, limit)

    return {
        "w_self1":  xavier(ks[0], in_feats, hidden_size),
        "w_neigh1": xavier(ks[1], in_feats, hidden_size),
        "b1":       jnp.zeros((1, hidden_size), jnp.float32),
        "w_self2":  xavier(ks[2], hidden_size, h_feats),
        "w_neigh2": xavier(ks[3], hidden_size, h_feats),
        "b2":       jnp.zeros((1, h_feats), jnp.float32),
    }


if __name__ == "__main__":
    key = jax.random.PRNGKey(0)
    k_graph, k_feat, k_param = jax.random.split(key, 3)

    # Small synthetic graph, big enough to exercise a (2, 2) grid.
    N, in_feats, hidden_size, h_feats = 256, 32, 64, 16
    TM = TK = 128

    # Adjacency A[i, j] = 1 iff edge j -> i, ~10% density, no self loops.
    adj = (jax.random.uniform(k_graph, (N, N)) < 0.1).astype(jnp.float32)
    adj = adj * (1.0 - jnp.eye(N, dtype=jnp.float32))
    # Block-mask the upper-right tile so at least one (TM, TK) adjacency block
    # is all-zero and the sparsity skip path is exercised.
    blk_i = jnp.arange(N)[:, None] // TM
    blk_j = jnp.arange(N)[None, :] // TK
    adj = adj * (blk_j <= blk_i).astype(jnp.float32)

    in_deg = jnp.sum(adj, axis=1, keepdims=True)          # in-degree per dst node
    a_norm = adj / jnp.maximum(in_deg, 1.0)                # mean-aggregation matrix

    x = jax.random.normal(k_feat, (N, in_feats), jnp.float32)
    params = init_params(k_param, in_feats, hidden_size, h_feats)

    # ---- pad to tile-aligned / lane-dense shapes; bf16 MXU operands ----
    n_p = _round_up(N, LANE)
    fin_p = _round_up(in_feats, LANE)
    hid_p = _round_up(hidden_size, LANE)
    out_p = _round_up(h_feats, LANE)

    a_pad = _pad2d(a_norm, n_p, n_p)
    occ = block_occupancy(a_pad, TM, TK)
    a_bf = a_pad.astype(jnp.bfloat16)
    x_bf = _pad2d(x, n_p, fin_p).astype(jnp.bfloat16)

    w1 = jnp.concatenate([_pad2d(params["w_self1"], fin_p, hid_p),
                          _pad2d(params["w_neigh1"], fin_p, hid_p)],
                         axis=0).astype(jnp.bfloat16)
    b1 = _pad2d(params["b1"], 1, hid_p)
    w2 = jnp.concatenate([_pad2d(params["w_self2"], hid_p, out_p),
                          _pad2d(params["w_neigh2"], hid_p, out_p)],
                         axis=0).astype(jnp.bfloat16)
    b2 = _pad2d(params["b2"], 1, out_p)

    fwd = jax.jit(graphsage_forward)
    out_padded = jax.block_until_ready(fwd(a_bf, occ, x_bf, w1, b1, w2, b2))
    out = out_padded[:N, :h_feats]

    # ---- pure-JAX reference on the same bf16-rounded inputs / weights ----
    a32 = a_bf[:N, :N].astype(jnp.float32)
    x32 = x_bf[:N, :in_feats].astype(jnp.float32)

    def bf16_round(w):
        return w.astype(jnp.bfloat16).astype(jnp.float32)

    def ref_layer(h32, ws, wn, b):
        neigh = a32 @ h32
        return jnp.maximum(h32 @ bf16_round(ws) + neigh @ bf16_round(wn) + b, 0.0)

    h1_ref = ref_layer(x32, params["w_self1"], params["w_neigh1"], params["b1"])
    h1_ref = h1_ref.astype(jnp.bfloat16).astype(jnp.float32)  # match inter-layer bf16
    out_ref = ref_layer(h1_ref, params["w_self2"], params["w_neigh2"], params["b2"])

    assert out.shape == (N, h_feats)
    assert bool(jnp.all(out >= 0.0))                       # final ReLU
    max_err = float(jnp.max(jnp.abs(out - out_ref)))
    assert bool(jnp.allclose(out, out_ref, rtol=2e-2, atol=2e-2)), max_err
    print("KERNEL_OK")
</pallas_src>

<mosaic_0001>
module attributes {stable_mosaic.version = 11 : i64} {
  func.func @sage_layer_kernel(%arg0: i32, %arg1: i32, %arg2: memref<4xi32, #tpu.memory_space<smem>>, %arg3: memref<128x128xbf16, #tpu.memory_space<vmem>>, %arg4: memref<128x128xbf16, #tpu.memory_space<vmem>>, %arg5: memref<128x128xbf16, #tpu.memory_space<vmem>>, %arg6: memref<256x128xbf16, #tpu.memory_space<vmem>>, %arg7: memref<1x128xf32, #tpu.memory_space<vmem>>, %arg8: memref<128x128xf32, #tpu.memory_space<vmem>>, %arg9: memref<128x128xf32, #tpu.memory_space<vmem>>) attributes {dimension_semantics = [#tpu.dimension_semantics<parallel>, #tpu.dimension_semantics<arbitrary>], iteration_bounds = array<i64: 2, 2>, scalar_prefetch = 1 : i64, scratch_operands = 1 : i64, tpu.core_type = #tpu.core_type<tc>, window_params = [{transform_indices = @transform_0, window_bounds = array<i64: 128, 128>}, {transform_indices = @transform_1, window_bounds = array<i64: 128, 128>}, {transform_indices = @transform_2, window_bounds = array<i64: 128, 128>}, {pipeline_mode = #tpu.pipeline_mode<synchronous>, transform_indices = @transform_3, window_bounds = array<i64: 256, 128>}, {pipeline_mode = #tpu.pipeline_mode<synchronous>, transform_indices = @transform_4, window_bounds = array<i64: 1, 128>}, {transform_indices = @transform_5, window_bounds = array<i64: 128, 128>}]} {
    %c0_i32 = arith.constant 0 : i32
    %0 = arith.cmpi eq, %arg1, %c0_i32 : i32
    %1 = arith.extui %0 : i1 to i32
    %c0_i32_0 = arith.constant 0 : i32
    %2 = arith.cmpi ne, %1, %c0_i32_0 : i32
    scf.if %2 {
      %cst = arith.constant 0.000000e+00 : f32
      %13 = vector.broadcast %cst : f32 to vector<128x128xf32>
      %c0 = arith.constant 0 : index
      %c0_4 = arith.constant 0 : index
      %14 = vector.load %arg9[%c0, %c0_4] : memref<128x128xf32, #tpu.memory_space<vmem>>, vector<128x128xf32>
      tpu.vector_store %arg9[%c0, %c0_4], %13 {strides = array<i32>} : memref<128x128xf32, #tpu.memory_space<vmem>>, vector<128x128xf32>,
    } else {
    }
    %c2_i32 = arith.constant 2 : i32
    %3 = arith.muli %arg0, %c2_i32 : i32
    %4 = arith.addi %3, %arg1 : i32
    %5 = arith.index_cast %4 : i32 to index
    %6 = memref.load %arg2[%5] : memref<4xi32, #tpu.memory_space<smem>>
    %c0_i32_1 = arith.constant 0 : i32
    %7 = arith.cmpi ne, %6, %c0_i32_1 : i32
    %8 = arith.extui %7 : i1 to i32
    %c0_i32_2 = arith.constant 0 : i32
    %9 = arith.cmpi ne, %8, %c0_i32_2 : i32
    scf.if %9 {
      %c0 = arith.constant 0 : index
      %c0_4 = arith.constant 0 : index
      %13 = vector.load %arg9[%c0, %c0_4] : memref<128x128xf32, #tpu.memory_space<vmem>>, vector<128x128xf32>
      %c0_5 = arith.constant 0 : index
      %c0_6 = arith.constant 0 : index
      %14 = vector.load %arg3[%c0_5, %c0_6] : memref<128x128xbf16, #tpu.memory_space<vmem>>, vector<128x128xbf16>
      %c0_7 = arith.constant 0 : index
      %c0_8 = arith.constant 0 : index
      %15 = vector.load %arg4[%c0_7, %c0_8] : memref<128x128xbf16, #tpu.memory_space<vmem>>, vector<128x128xbf16>
      %cst = arith.constant dense<0.000000e+00> : vector<128x128xf32>
      %16 = tpu.matmul %14, %15, %cst {dimension_numbers = #tpu.dot_dimension_numbers<[1], [0], [0], [1], [0, 0, 1, 1], [], []>} : vector<128x128xbf16>, vector<128x128xbf16>, vector<128x128xf32> -> vector<128x128xf32>
      %17 = arith.addf %13, %16 : vector<128x128xf32>
      %c0_9 = arith.constant 0 : index
      %c0_10 = arith.constant 0 : index
      %18 = vector.load %arg9[%c0_9, %c0_10] : memref<128x128xf32, #tpu.memory_space<vmem>>, vector<128x128xf32>
      tpu.vector_store %arg9[%c0_9, %c0_10], %17 {strides = array<i32>} : memref<128x128xf32, #tpu.memory_space<vmem>>, vector<128x128xf32>,
    } else {
    }
    %c1_i32 = arith.constant 1 : i32
    %10 = arith.cmpi eq, %arg1, %c1_i32 : i32
    %11 = arith.extui %10 : i1 to i32
    %c0_i32_3 = arith.constant 0 : i32
    %12 = arith.cmpi ne, %11, %c0_i32_3 : i32
    scf.if %12 {
      %c0 = arith.constant 0 : index
      %c0_4 = arith.constant 0 : index
      %13 = vector.load %arg5[%c0, %c0_4] : memref<128x128xbf16, #tpu.memory_space<vmem>>, vector<128x128xbf16>
      %c0_5 = arith.constant 0 : index
      %c0_6 = arith.constant 0 : index
      %14 = vector.load %arg9[%c0_5, %c0_6] : memref<128x128xf32, #tpu.memory_space<vmem>>, vector<128x128xf32>
      %15 = arith.truncf %14 : vector<128x128xf32> to vector<128x128xbf16>
      %16 = tpu.concatenate %13, %15 in 1 : vector<128x128xbf16>, vector<128x128xbf16> -> vector<128x256xbf16>
      %c0_7 = arith.constant 0 : index
      %c0_8 = arith.constant 0 : index
      %17 = vector.load %arg6[%c0_7, %c0_8] : memref<256x128xbf16, #tpu.memory_space<vmem>>, vector<256x128xbf16>
      %cst = arith.constant dense<0.000000e+00> : vector<128x128xf32>
      %18 = tpu.matmul %16, %17, %cst {dimension_numbers = #tpu.dot_dimension_numbers<[1], [0], [0], [1], [0, 0, 1, 1], [], []>} : vector<128x256xbf16>, vector<256x128xbf16>, vector<128x128xf32> -> vector<128x128xf32>
      %c0_9 = arith.constant 0 : index
      %c0_10 = arith.constant 0 : index
      %19 = vector.load %arg7[%c0_9, %c0_10] : memref<1x128xf32, #tpu.memory_space<vmem>>, vector<1x128xf32>
      %20 = vector.broadcast %19 : vector<1x128xf32> to vector<128x128xf32>
      %21 = arith.addf %18, %20 : vector<128x128xf32>
      %cst_11 = arith.constant 0.000000e+00 : f32
      %22 = vector.broadcast %cst_11 : f32 to vector<128x128xf32>
      %23 = arith.maximumf %21, %22 : vector<128x128xf32>
      %c0_12 = arith.constant 0 : index
      %c0_13 = arith.constant 0 : index
      %24 = vector.load %arg8[%c0_12, %c0_13] : memref<128x128xf32, #tpu.memory_space<vmem>>, vector<128x128xf32>
      tpu.vector_store %arg8[%c0_12, %c0_13], %23 {strides = array<i32>} : memref<128x128xf32, #tpu.memory_space<vmem>>, vector<128x128xf32>,
    } else {
    }
    return
  }
  func.func @transform_0(%arg0: i32, %arg1: i32, %arg2: memref<4xi32, #tpu.memory_space<smem>>) -> (i32, i32) {
    %c0_i32 = arith.constant 0 : i32
    return %arg0, %arg1 : i32, i32
  }
  func.func @transform_1(%arg0: i32, %arg1: i32, %arg2: memref<4xi32, #tpu.memory_space<smem>>) -> (i32, i32) {
    %c0_i32 = arith.constant 0 : i32
    %c0_i32_0 = arith.constant 0 : i32
    return %arg1, %c0_i32 : i32, i32
  }
  func.func @transform_2(%arg0: i32, %arg1: i32, %arg2: memref<4xi32, #tpu.memory_space<smem>>) -> (i32, i32) {
    %c0_i32 = arith.constant 0 : i32
    %c0_i32_0 = arith.constant 0 : i32
    return %arg0, %c0_i32 : i32, i32
  }
  func.func @transform_3(%arg0: i32, %arg1: i32, %arg2: memref<4xi32, #tpu.memory_space<smem>>) -> (i32, i32) {
    %c0_i32 = arith.constant 0 : i32
    %c0_i32_0 = arith.constant 0 : i32
    %c0_i32_1 = arith.constant 0 : i32
    return %c0_i32, %c0_i32_0 : i32, i32
  }
  func.func @transform_4(%arg0: i32, %arg1: i32, %arg2: memref<4xi32, #tpu.memory_space<smem>>) -> (i32, i32) {
    %c0_i32 = arith.constant 0 : i32
    %c0_i32_0 = arith.constant 0 : i32
    %c0_i32_1 = arith.constant 0 : i32
    return %c0_i32, %c0_i32_0 : i32, i32
  }
  func.func @transform_5(%arg0: i32, %arg1: i32, %arg2: memref<4xi32, #tpu.memory_space<smem>>) -> (i32, i32) {
    %c0_i32 = arith.constant 0 : i32
    %c0_i32_0 = arith.constant 0 : i32
    return %arg0, %c0_i32 : i32, i32
  }
}

module attributes {stable_mosaic.version = 11 : i64} {
  func.func @sage_layer_kernel(%arg0: i32, %arg1: i32, %arg2: memref<4xi32, #tpu.memory_space<smem>>, %arg3: memref<128x128xbf16, #tpu.memory_space<vmem>>, %arg4: memref<128x128xbf16, #tpu.memory_space<vmem>>, %arg5: memref<128x128xbf16, #tpu.memory_space<vmem>>, %arg6: memref<256x128xbf16, #tpu.memory_space<vmem>>, %arg7: memref<1x128xf32, #tpu.memory_space<vmem>>, %arg8: memref<128x128xbf16, #tpu.memory_space<vmem>>, %arg9: memref<128x128xf32, #tpu.memory_space<vmem>>) attributes {dimension_semantics = [#tpu.dimension_semantics<parallel>, #tpu.dimension_semantics<arbitrary>], iteration_bounds = array<i64: 2, 2>, scalar_prefetch = 1 : i64, scratch_operands = 1 : i64, tpu.core_type = #tpu.core_type<tc>, window_params = [{transform_indices = @transform_0, window_bounds = array<i64: 128, 128>}, {transform_indices = @transform_1, window_bounds = array<i64: 128, 128>}, {transform_indices = @transform_2, window_bounds = array<i64: 128, 128>}, {pipeline_mode = #tpu.pipeline_mode<synchronous>, transform_indices = @transform_3, window_bounds = array<i64: 256, 128>}, {pipeline_mode = #tpu.pipeline_mode<synchronous>, transform_indices = @transform_4, window_bounds = array<i64: 1, 128>}, {transform_indices = @transform_5, window_bounds = array<i64: 128, 128>}]} {
    %c0_i32 = arith.constant 0 : i32
    %0 = arith.cmpi eq, %arg1, %c0_i32 : i32
    %1 = arith.extui %0 : i1 to i32
    %c0_i32_0 = arith.constant 0 : i32
    %2 = arith.cmpi ne, %1, %c0_i32_0 : i32
    scf.if %2 {
      %cst = arith.constant 0.000000e+00 : f32
      %13 = vector.broadcast %cst : f32 to vector<128x128xf32>
      %c0 = arith.constant 0 : index
      %c0_4 = arith.constant 0 : index
      %14 = vector.load %arg9[%c0, %c0_4] : memref<128x128xf32, #tpu.memory_space<vmem>>, vector<128x128xf32>
      tpu.vector_store %arg9[%c0, %c0_4], %13 {strides = array<i32>} : memref<128x128xf32, #tpu.memory_space<vmem>>, vector<128x128xf32>,
    } else {
    }
    %c2_i32 = arith.constant 2 : i32
    %3 = arith.muli %arg0, %c2_i32 : i32
    %4 = arith.addi %3, %arg1 : i32
    %5 = arith.index_cast %4 : i32 to index
    %6 = memref.load %arg2[%5] : memref<4xi32, #tpu.memory_space<smem>>
    %c0_i32_1 = arith.constant 0 : i32
    %7 = arith.cmpi ne, %6, %c0_i32_1 : i32
    %8 = arith.extui %7 : i1 to i32
    %c0_i32_2 = arith.constant 0 : i32
    %9 = arith.cmpi ne, %8, %c0_i32_2 : i32
    scf.if %9 {
      %c0 = arith.constant 0 : index
      %c0_4 = arith.constant 0 : index
      %13 = vector.load %arg9[%c0, %c0_4] : memref<128x128xf32, #tpu.memory_space<vmem>>, vector<128x128xf32>
      %c0_5 = arith.constant 0 : index
      %c0_6 = arith.constant 0 : index
      %14 = vector.load %arg3[%c0_5, %c0_6] : memref<128x128xbf16, #tpu.memory_space<vmem>>, vector<128x128xbf16>
      %c0_7 = arith.constant 0 : index
      %c0_8 = arith.constant 0 : index
      %15 = vector.load %arg4[%c0_7, %c0_8] : memref<128x128xbf16, #tpu.memory_space<vmem>>, vector<128x128xbf16>
      %cst = arith.constant dense<0.000000e+00> : vector<128x128xf32>
      %16 = tpu.matmul %14, %15, %cst {dimension_numbers = #tpu.dot_dimension_numbers<[1], [0], [0], [1], [0, 0, 1, 1], [], []>} : vector<128x128xbf16>, vector<128x128xbf16>, vector<128x128xf32> -> vector<128x128xf32>
      %17 = arith.addf %13, %16 : vector<128x128xf32>
      %c0_9 = arith.constant 0 : index
      %c0_10 = arith.constant 0 : index
      %18 = vector.load %arg9[%c0_9, %c0_10] : memref<128x128xf32, #tpu.memory_space<vmem>>, vector<128x128xf32>
      tpu.vector_store %arg9[%c0_9, %c0_10], %17 {strides = array<i32>} : memref<128x128xf32, #tpu.memory_space<vmem>>, vector<128x128xf32>,
    } else {
    }
    %c1_i32 = arith.constant 1 : i32
    %10 = arith.cmpi eq, %arg1, %c1_i32 : i32
    %11 = arith.extui %10 : i1 to i32
    %c0_i32_3 = arith.constant 0 : i32
    %12 = arith.cmpi ne, %11, %c0_i32_3 : i32
    scf.if %12 {
      %c0 = arith.constant 0 : index
      %c0_4 = arith.constant 0 : index
      %13 = vector.load %arg5[%c0, %c0_4] : memref<128x128xbf16, #tpu.memory_space<vmem>>, vector<128x128xbf16>
      %c0_5 = arith.constant 0 : index
      %c0_6 = arith.constant 0 : index
      %14 = vector.load %arg9[%c0_5, %c0_6] : memref<128x128xf32, #tpu.memory_space<vmem>>, vector<128x128xf32>
      %15 = arith.truncf %14 : vector<128x128xf32> to vector<128x128xbf16>
      %16 = tpu.concatenate %13, %15 in 1 : vector<128x128xbf16>, vector<128x128xbf16> -> vector<128x256xbf16>
      %c0_7 = arith.constant 0 : index
      %c0_8 = arith.constant 0 : index
      %17 = vector.load %arg6[%c0_7, %c0_8] : memref<256x128xbf16, #tpu.memory_space<vmem>>, vector<256x128xbf16>
      %cst = arith.constant dense<0.000000e+00> : vector<128x128xf32>
      %18 = tpu.matmul %16, %17, %cst {dimension_numbers = #tpu.dot_dimension_numbers<[1], [0], [0], [1], [0, 0, 1, 1], [], []>} : vector<128x256xbf16>, vector<256x128xbf16>, vector<128x128xf32> -> vector<128x128xf32>
      %c0_9 = arith.constant 0 : index
      %c0_10 = arith.constant 0 : index
      %19 = vector.load %arg7[%c0_9, %c0_10] : memref<1x128xf32, #tpu.memory_space<vmem>>, vector<1x128xf32>
      %20 = vector.broadcast %19 : vector<1x128xf32> to vector<128x128xf32>
      %21 = arith.addf %18, %20 : vector<128x128xf32>
      %cst_11 = arith.constant 0.000000e+00 : f32
      %22 = vector.broadcast %cst_11 : f32 to vector<128x128xf32>
      %23 = arith.maximumf %21, %22 : vector<128x128xf32>
      %24 = arith.truncf %23 : vector<128x128xf32> to vector<128x128xbf16>
      %c0_12 = arith.constant 0 : index
      %c0_13 = arith.constant 0 : index
      %25 = vector.load %arg8[%c0_12, %c0_13] : memref<128x128xbf16, #tpu.memory_space<vmem>>, vector<128x128xbf16>
      tpu.vector_store %arg8[%c0_12, %c0_13], %24 {strides = array<i32>} : memref<128x128xbf16, #tpu.memory_space<vmem>>, vector<128x128xbf16>,
    } else {
    }
    return
  }
  func.func @transform_0(%arg0: i32, %arg1: i32, %arg2: memref<4xi32, #tpu.memory_space<smem>>) -> (i32, i32) {
    %c0_i32 = arith.constant 0 : i32
    return %arg0, %arg1 : i32, i32
  }
  func.func @transform_1(%arg0: i32, %arg1: i32, %arg2: memref<4xi32, #tpu.memory_space<smem>>) -> (i32, i32) {
    %c0_i32 = arith.constant 0 : i32
    %c0_i32_0 = arith.constant 0 : i32
    return %arg1, %c0_i32 : i32, i32
  }
  func.func @transform_2(%arg0: i32, %arg1: i32, %arg2: memref<4xi32, #tpu.memory_space<smem>>) -> (i32, i32) {
    %c0_i32 = arith.constant 0 : i32
    %c0_i32_0 = arith.constant 0 : i32
    return %arg0, %c0_i32 : i32, i32
  }
  func.func @transform_3(%arg0: i32, %arg1: i32, %arg2: memref<4xi32, #tpu.memory_space<smem>>) -> (i32, i32) {
    %c0_i32 = arith.constant 0 : i32
    %c0_i32_0 = arith.constant 0 : i32
    %c0_i32_1 = arith.constant 0 : i32
    return %c0_i32, %c0_i32_0 : i32, i32
  }
  func.func @transform_4(%arg0: i32, %arg1: i32, %arg2: memref<4xi32, #tpu.memory_space<smem>>) -> (i32, i32) {
    %c0_i32 = arith.constant 0 : i32
    %c0_i32_0 = arith.constant 0 : i32
    %c0_i32_1 = arith.constant 0 : i32
    return %c0_i32, %c0_i32_0 : i32, i32
  }
  func.func @transform_5(%arg0: i32, %arg1: i32, %arg2: memref<4xi32, #tpu.memory_space<smem>>) -> (i32, i32) {
    %c0_i32 = arith.constant 0 : i32
    %c0_i32_0 = arith.constant 0 : i32
    return %arg0, %c0_i32 : i32, i32
  }
}

</mosaic_0001>

<llo_original>
// kernel: graphsage_forward.2
$region0: #{graphsage_forward.2}
  #allocation0 [shape = 'u32[]', space=smem, size = 0x4, offset = 0x4, fixed_abs, tag = 'smem constant byte address 0x4 - core index']
  #allocation1 [shape = 'u32[144,128]{1,0:T(1,128)}', space=vmem, size = 0x12000, scoped, tag = 'internal scratch']
  #allocation2 [shape = 'f32[128,128]{1,0:T(8,128)}', space=vmem, size = 0x10000, scoped, tag = 'scratch operand']
  #allocation3 [shape = 's32[1]{0}', space=sflag, size = 0x4, scoped, tag = 'scoped memory for graphsage_forward.2']
  #allocation4 [shape = 'u8[512]{0}', space=smem, size = 0x200, scoped, tag = 'prefetched SMEM operand 0']
  %s0 = inlined_call_operand.vmem [shape: s32[4], index: 0, kind: input, shape index: {}]
  %s1 = inlined_call_operand.hbm [shape: bf16[256,256], index: 1, kind: input, shape index: {}]
  %s2 = inlined_call_operand.hbm [shape: bf16[256,128], index: 2, kind: input, shape index: {}, may-alias: {2,3}]
  %s3 = inlined_call_operand.hbm [shape: bf16[256,128], index: 3, kind: input, shape index: {}, may-alias: {2,3}]
  %s4 = inlined_call_operand.hbm [shape: bf16[256,128], index: 4, kind: input, shape index: {}]
  %s5 = inlined_call_operand.vmem [shape: f32[1,128], index: 5, kind: input, shape index: {}]
  %s6 = inlined_call_operand.vmem [shape: bf16[256,128], index: 6, kind: output, shape index: {}]
  %s7 = sld [smem:[#allocation0]]
  $region81: #{graphsage_forward.2} parent=0
    _
  %s9 = ssub.s32 1, %s7
  %s10 = scalar_select 0, %s9, %s7
  %s11 = sshll.u32 %s0, 4
  %s12 = int_to_ptr.vmem [resolvable:$true] %s11
  %14 = dma.vmem_to_smem %s12, 16, [#allocation4], [#allocation3]
  %15 = dma.done [#allocation3], 16
  %16 = sfence
  $region1: #{graphsage_forward.2} parent=0
    #allocation5 [shape = 'u8[65536]{0}', space=vmem, size = 0x10000, scoped, tag = 'input window, operand 1']
    #allocation6 [shape = 's32[2]{0}', space=sflag, size = 0x8, scoped, tag = 'scoped memory for graphsage_forward.2']
    #allocation7 [shape = 'u8[65536]{0}', space=vmem, size = 0x10000, scoped, tag = 'input window, operand 2']
    #allocation8 [shape = 's32[2]{0}', space=sflag, size = 0x8, scoped, tag = 'scoped memory for graphsage_forward.2']
    #allocation9 [shape = 'u8[65536]{0}', space=vmem, size = 0x10000, scoped, tag = 'input window, operand 3']
    #allocation10 [shape = 'u8[65536]{0}', space=vmem, size = 0x10000, scoped, tag = 'input window, operand 4, single buffered']
    #allocation11 [shape = 's32[1]{0}', space=sflag, size = 0x4, scoped, tag = 'scoped memory for graphsage_forward.2']
    %17 = vsyncpa [#allocation6], 0
    %s18 = scalar_lea.sflag [#allocation6], 1
    %19 = vsyncpa %s18, 0
    %20 = vsyncpa [#allocation8], 0
    %s21 = scalar_lea.sflag [#allocation8], 1
    %22 = vsyncpa %s21, 0
    %23 = vsyncpa [#allocation11], 0
    loop: start=0, step=1, limit=6
    $region2: #{graphsage_forward.2} parent=1 // loop_pre_header
      _
    $region3: #{graphsage_forward.2} parent=1 // loop_header
      %s25 = sphi 0, %s29
      %p26 = scmp.ge.s32.totalorder %s25, 6
      %s32 = sphi 0, %s44
      %s33 = sphi 0, %s40
      %s34 = sphi 0, %s32
      %s35 = sphi 0, %s33
      %s36 = sphi 0, %s34
      %s37 = sphi 0, %s35
      %s49 = sphi 0, %s51
      %s52 = sphi 0, %s49
      %s53 = sphi 0, %s52
      %s69 = sphi 0, %s53
      %s75 = sphi 0, %s77
      %s78 = sphi 0, %s75
      %s79 = sphi 0, %s78
      %s95 = sphi 0, %s79
      %s101 = sphi 0, %s103
      %s104 = sphi 0, %s101
      %s105 = sphi 0, %s104
      %s121 = sphi 0, %s105
      %s125 = sphi 0, %s125
      %s127 = sphi 0, %s125
      %s128 = sphi 0, %s127
      %s142 = sphi 0, %s128
      %s146 = sphi 0, %s146
      %s148 = sphi 0, %s146
      %s149 = sphi 0, %s148
      %s163 = sphi 0, %s149
      %s169 = sphi 0, %s171
      %s172 = sphi 0, %s169
      %s173 = sphi 0, %s172
      %s189 = sphi 0, %s173
    $region4: #{graphsage_forward.2} parent=1 // loop_header_branch
      %28 = sbr.rel (%p26) target = $region8
    $region5: #{graphsage_forward.2} parent=1 // loop_body
      %s30 = ssub.s32 %s25, 1
      %s31 = ssub.s32 %s25, 2
      %s38 = sadd.s32 1, %s33
      %p39 = scmp.ge.s32.totalorder %s38, 2
      %s40 = scalar_select %p39, 0, %s38
      %s41 = sadd.s32 1, %s32
      %s42 = scalar_select %p39, %s41, %s32
      %p43 = scmp.ge.s32.totalorder %s42, 2
      %s44 = scalar_select %p43, 0, %s42
      %s45 = ssub.s32 %s32, %s44
      %s46 = ssub.s32 %s33, %s40
      %s47 = sor.u32 %s45, %s46
      %p48 = scmp.eq.s32.totalorder %s47, 0
      %s50 = sadd.s32 %s49, 1
      %s51 = scalar_select %p48, %s49, %s50
      %p54 = pneg %p48
      %p55 = scmp.eq.s32.totalorder %s25, 3
      %p56 = por %p54, %p55
      %p57 = scmp.ne.s32.totalorder %s49, %s52
      %p58 = scmp.eq.s32.totalorder %s25, 0
      %p59 = por %p57, %p58
      %p60 = scmp.ne.s32.totalorder %s49, %s52
      %p61 = scmp.eq.s32.totalorder %s30, 3
      %p62 = por %p60, %p61
      %p63 = scmp.ne.s32.totalorder %s52, %s53
      %p64 = scmp.eq.s32.totalorder %s30, 0
      %p65 = por %p63, %p64
      %p66 = scmp.ne.s32.totalorder %s52, %s53
      %p67 = scmp.eq.s32.totalorder %s31, 3
      %p68 = por %p66, %p67
      %p70 = scmp.ne.s32.totalorder %s53, %s69
      %p71 = scmp.eq.s32.totalorder %s31, 0
      %p72 = por %p70, %p71
      %s73 = ssub.s32 %s33, %s40
      %p74 = scmp.eq.s32.totalorder %s73, 0
      %s76 = sadd.s32 %s75, 1
      %s77 = scalar_select %p74, %s75, %s76
      %p80 = pneg %p74
      %p81 = scmp.eq.s32.totalorder %s25, 3
      %p82 = por %p80, %p81
      %p83 = scmp.ne.s32.totalorder %s75, %s78
      %p84 = scmp.eq.s32.totalorder %s25, 0
      %p85 = por %p83, %p84
      %p86 = scmp.ne.s32.totalorder %s75, %s78
      %p87 = scmp.eq.s32.totalorder %s30, 3
      %p88 = por %p86, %p87
      %p89 = scmp.ne.s32.totalorder %s78, %s79
      %p90 = scmp.eq.s32.totalorder %s30, 0
      %p91 = por %p89, %p90
      %p92 = scmp.ne.s32.totalorder %s78, %s79
      %p93 = scmp.eq.s32.totalorder %s31, 3
      %p94 = por %p92, %p93
      %p96 = scmp.ne.s32.totalorder %s79, %s95
      %p97 = scmp.eq.s32.totalorder %s31, 0
      %p98 = por %p96, %p97
      %s99 = ssub.s32 %s32, %s44
      %p100 = scmp.eq.s32.totalorder %s99, 0
      %s102 = sadd.s32 %s101, 1
      %s103 = scalar_select %p100, %s101, %s102
      %p106 = pneg %p100
      %p107 = scmp.eq.s32.totalorder %s25, 3
      %p108 = por %p106, %p107
      %p109 = scmp.ne.s32.totalorder %s101, %s104
      %p110 = scmp.eq.s32.totalorder %s25, 0
      %p111 = por %p109, %p110
      %p112 = scmp.ne.s32.totalorder %s101, %s104
      %p113 = scmp.eq.s32.totalorder %s30, 3
      %p114 = por %p112, %p113
      %p115 = scmp.ne.s32.totalorder %s104, %s105
      %p116 = scmp.eq.s32.totalorder %s30, 0
      %p117 = por %p115, %p116
      %p118 = scmp.ne.s32.totalorder %s104, %s105
      %p119 = scmp.eq.s32.totalorder %s31, 3
      %p120 = por %p118, %p119
      %p122 = scmp.ne.s32.totalorder %s105, %s121
      %p123 = scmp.eq.s32.totalorder %s31, 0
      %p124 = por %p122, %p123
      %s126 = sadd.s32 %s125, 1
      %p129 = scmp.eq.s32.totalorder %s25, 3
      %p130 = scmp.ne.s32.totalorder %s125, %s127
      %p131 = scmp.eq.s32.totalorder %s25, 0
      %p132 = por %p130, %p131
      %p133 = scmp.ne.s32.totalorder %s125, %s127
      %p134 = scmp.eq.s32.totalorder %s30, 3
      %p135 = por %p133, %p134
      %p136 = scmp.ne.s32.totalorder %s127, %s128
      %p137 = scmp.eq.s32.totalorder %s30, 0
      %p138 = por %p136, %p137
      %p139 = scmp.ne.s32.totalorder %s127, %s128
      %p140 = scmp.eq.s32.totalorder %s31, 3
      %p141 = por %p139, %p140
      %p143 = scmp.ne.s32.totalorder %s128, %s142
      %p144 = scmp.eq.s32.totalorder %s31, 0
      %p145 = por %p143, %p144
      %s147 = sadd.s32 %s146, 1
      %p150 = scmp.eq.s32.totalorder %s25, 3
      %p151 = scmp.ne.s32.totalorder %s146, %s148
      %p152 = scmp.eq.s32.totalorder %s25, 0
      %p153 = por %p151, %p152
      %p154 = scmp.ne.s32.totalorder %s146, %s148
      %p155 = scmp.eq.s32.totalorder %s30, 3
      %p156 = por %p154, %p155
      %p157 = scmp.ne.s32.totalorder %s148, %s149
      %p158 = scmp.eq.s32.totalorder %s30, 0
      %p159 = por %p157, %p158
      %p160 = scmp.ne.s32.totalorder %s148, %s149
      %p161 = scmp.eq.s32.totalorder %s31, 3
      %p162 = por %p160, %p161
      %p164 = scmp.ne.s32.totalorder %s149, %s163
      %p165 = scmp.eq.s32.totalorder %s31, 0
      %p166 = por %p164, %p165
      %s167 = ssub.s32 %s32, %s44
      %p168 = scmp.eq.s32.totalorder %s167, 0
      %s170 = sadd.s32 %s169, 1
      %s171 = scalar_select %p168, %s169, %s170
      %p174 = pneg %p168
      %p175 = scmp.eq.s32.totalorder %s25, 3
      %p176 = por %p174, %p175
      %p177 = scmp.ne.s32.totalorder %s169, %s172
      %p178 = scmp.eq.s32.totalorder %s25, 0
      %p179 = por %p177, %p178
      %p180 = scmp.ne.s32.totalorder %s169, %s172
      %p181 = scmp.eq.s32.totalorder %s30, 3
      %p182 = por %p180, %p181
      %p183 = scmp.ne.s32.totalorder %s172, %s173
      %p184 = scmp.eq.s32.totalorder %s30, 0
      %p185 = por %p183, %p184
      %p186 = scmp.ne.s32.totalorder %s172, %s173
      %p187 = scmp.eq.s32.totalorder %s31, 3
      %p188 = por %p186, %p187
      %p190 = scmp.ne.s32.totalorder %s173, %s189
      %p191 = scmp.eq.s32.totalorder %s31, 0
      %p192 = por %p190, %p191
      %p193 = scmp.le.s32.totalorder 1, %s25
      %p194 = scmp.lt.s32.totalorder %s25, 5
      %p195 = pnand %p193, %p194
      %p196 = pneg %p195
      // Predicated region
      $region9: #{graphsage_forward.2} parent=5 // pred_check
        _
      $region10: #{graphsage_forward.2} parent=5 // pred_check_branch
        %198 = sbr.rel (%p195) target = $region12
      $region11: #{graphsage_forward.2} parent=5 // pred_region
        %s199 = ssub.s32 %s25, 1
        // Predicated region
        $region13: #{graphsage_forward.2} parent=11 // pred_check
          %p200 = pneg %p138
        $region14: #{graphsage_forward.2} parent=11 // pred_check_branch
          %202 = sbr.rel (%p200) target = $region16
        $region15: #{graphsage_forward.2} parent=11 // pred_region
          %s204 = ssub.s32 2048, 2048
          %205 = vsyncadd [#allocation11], %s204
          %s206 = sshll.u32 [#allocation10], 4
          %s207 = int_to_ptr.vmem [resolvable:$true] %s206
          %212 = dma.hbm_to_vmem [thread:$0]  %s4, 2048, %s207, [#allocation11], 64, 64, 4
        $region16: #{graphsage_forward.2} parent=11 // pred_fallthru
          _
        // Predicated region
        $region17: #{graphsage_forward.2} parent=11 // pred_check
          %p213 = pneg %p159
        $region18: #{graphsage_forward.2} parent=11 // pred_check_branch
          %215 = sbr.rel (%p213) target = $region20
        $region19: #{graphsage_forward.2} parent=11 // pred_region
          _
        $region20: #{graphsage_forward.2} parent=11 // pred_fallthru
          _
      $region12: #{graphsage_forward.2} parent=5 // pred_fallthru
        _
      %p216 = scmp.lt.s32.totalorder %s25, 4
      // Predicated region
      $region21: #{graphsage_forward.2} parent=5 // pred_check
        %p217 = pneg %p216
      $region22: #{graphsage_forward.2} parent=5 // pred_check_branch
        %219 = sbr.rel (%p217) target = $region24
      $region23: #{graphsage_forward.2} parent=5 // pred_region
        // Predicated region
        $region25: #{graphsage_forward.2} parent=23 // pred_check
          %p220 = pneg %p59
        $region26: #{graphsage_forward.2} parent=23 // pred_check_branch
          %222 = sbr.rel (%p220) target = $region28
        $region27: #{graphsage_forward.2} parent=23 // pred_region
          %s223 = sand.u32 %s49, 1
          %s224 = scalar_lea.sflag [#allocation6], %s223
          %s225 = sand.u32 %s49, 1
          %s226 = smul.addr %s225, 64
          %s227 = scalar_lea.vmem [#allocation5], %s226
          %s228 = smul.u32 16, %s32
          %s230 = ssub.s32 1024, 1024
          %231 = vsyncadd %s224, %s230
          %s232 = smul.addr %s228, 2
          %s233 = sadd.s32 %s33, %s232
          %s234 = smul.addr %s233, 64
          %s235 = scalar_lea.hbm %s1, %s234
          %s236 = sshll.u32 %s227, 4
          %s237 = int_to_ptr.vmem [resolvable:$true] %s236
          %242 = dma.hbm_to_vmem [thread:$0]  %s235, 1024, %s237, %s224, 128, 64, 4
        $region28: #{graphsage_forward.2} parent=23 // pred_fallthru
          _
        // Predicated region
        $region29: #{graphsage_forward.2} parent=23 // pred_check
          %p243 = pneg %p85
        $region30: #{graphsage_forward.2} parent=23 // pred_check_branch
          %245 = sbr.rel (%p243) target = $region32
        $region31: #{graphsage_forward.2} parent=23 // pred_region
          %s246 = sand.u32 %s25, 1
          %s247 = scalar_lea.sflag [#allocation8], %s246
          %s248 = sand.u32 %s75, 1
          %s249 = smul.addr %s248, 64
          %s250 = scalar_lea.vmem [#allocation7], %s249
          %s251 = smul.u32 16, %s33
          %s253 = ssub.s32 1024, 1024
          %254 = vsyncadd %s247, %s253
          %s255 = smul.addr %s251, 64
          %s256 = scalar_lea.hbm %s2, %s255
          %s257 = sshll.u32 %s250, 4
          %s258 = int_to_ptr.vmem [resolvable:$true] %s257
          %263 = dma.hbm_to_vmem [thread:$0]  %s256, 1024, %s258, %s247, 64, 64, 4
        $region32: #{graphsage_forward.2} parent=23 // pred_fallthru
          _
        // Predicated region
        $region33: #{graphsage_forward.2} parent=23 // pred_check
          %p264 = pneg %p111
        $region34: #{graphsage_forward.2} parent=23 // pred_check_branch
          %266 = sbr.rel (%p264) target = $region36
        $region35: #{graphsage_forward.2} parent=23 // pred_region
          %s267 = sand.u32 %s25, 1
          %s268 = scalar_lea.sflag [#allocation8], %s267
          %s269 = sand.u32 %s101, 1
          %s270 = smul.addr %s269, 64
          %s271 = scalar_lea.vmem [#allocation9], %s270
          %s272 = smul.u32 16, %s32
          %s274 = ssub.s32 1024, 1024
          %275 = vsyncadd %s268, %s274
          %s276 = smul.addr %s272, 64
          %s277 = scalar_lea.hbm %s3, %s276
          %s278 = sshll.u32 %s271, 4
          %s279 = int_to_ptr.vmem [resolvable:$true] %s278
          %284 = dma.hbm_to_vmem [thread:$0]  %s277, 1024, %s279, %s268, 64, 64, 4
        $region36: #{graphsage_forward.2} parent=23 // pred_fallthru
          _
      $region24: #{graphsage_forward.2} parent=5 // pred_fallthru
        _
      %p285 = scmp.le.s32.totalorder 1, %s25
      %p286 = scmp.lt.s32.totalorder %s25, 5
      %p287 = pnand %p285, %p286
      %p288 = pneg %p287
      // Predicated region
      $region37: #{graphsage_forward.2} parent=5 // pred_check
        _
      $region38: #{graphsage_forward.2} parent=5 // pred_check_branch
        %290 = sbr.rel (%p287) target = $region40
      $region39: #{graphsage_forward.2} parent=5 // pred_region
        %s291 = ssub.s32 %s25, 1
        %s292 = sand.u32 %s52, 1
        %s293 = scalar_lea.sflag [#allocation6], %s292
        %s294 = sand.u32 %s52, 1
        %s295 = smul.addr %s294, 64
        %s296 = scalar_lea.vmem [#allocation5], %s295
        // Predicated region
        $region41: #{graphsage_forward.2} parent=39 // pred_check
          %p297 = pneg %p65
        $region42: #{graphsage_forward.2} parent=39 // pred_check_branch
          %299 = sbr.rel (%p297) target = $region44
        $region43: #{graphsage_forward.2} parent=39 // pred_region
          %300 = dma.done %s293, 1024
        $region44: #{graphsage_forward.2} parent=39 // pred_fallthru
          _
        %s301 = sand.u32 %s30, 1
        %s302 = scalar_lea.sflag [#allocation8], %s301
        %s303 = sand.u32 %s78, 1
        %s304 = smul.addr %s303, 64
        %s305 = scalar_lea.vmem [#allocation7], %s304
        // Predicated region
        $region45: #{graphsage_forward.2} parent=39 // pred_check
          %p306 = pneg %p91
        $region46: #{graphsage_forward.2} parent=39 // pred_check_branch
          %308 = sbr.rel (%p306) target = $region48
        $region47: #{graphsage_forward.2} parent=39 // pred_region
          %309 = dma.done %s302, 1024
        $region48: #{graphsage_forward.2} parent=39 // pred_fallthru
          _
        %s310 = sand.u32 %s30, 1
        %s311 = scalar_lea.sflag [#allocation8], %s310
        %s312 = sand.u32 %s104, 1
        %s313 = smul.addr %s312, 64
        %s314 = scalar_lea.vmem [#allocation9], %s313
        // Predicated region
        $region49: #{graphsage_forward.2} parent=39 // pred_check
          %p315 = pneg %p117
        $region50: #{graphsage_forward.2} parent=39 // pred_check_branch
          %317 = sbr.rel (%p315) target = $region52
        $region51: #{graphsage_forward.2} parent=39 // pred_region
          %318 = dma.done %s311, 1024
        $region52: #{graphsage_forward.2} parent=39 // pred_fallthru
          _
        // Predicated region
        $region53: #{graphsage_forward.2} parent=39 // pred_check
          %p319 = pneg %p138
        $region54: #{graphsage_forward.2} parent=39 // pred_check_branch
          %321 = sbr.rel (%p319) target = $region56
        $region55: #{graphsage_forward.2} parent=39 // pred_region
          %322 = dma.done [#allocation11], 2048
        $region56: #{graphsage_forward.2} parent=39 // pred_fallthru
          _
        %s323 = sand.u32 %s52, 1
        %s324 = scalar_lea.sflag [#allocation6], %s323
        %s325 = sand.u32 %s52, 1
        %s326 = smul.addr %s325, 64
        %s327 = scalar_lea.vmem [#allocation5], %s326
        %p328 = pneg %p65
        %p329 = pneg %p62
        %s330 = sand.u32 %s30, 1
        %s331 = scalar_lea.sflag [#allocation8], %s330
        %s332 = sand.u32 %s78, 1
        %s333 = smul.addr %s332, 64
        %s334 = scalar_lea.vmem [#allocation7], %s333
        %p335 = pneg %p91
        %p336 = pneg %p88
        %s337 = sand.u32 %s30, 1
        %s338 = scalar_lea.sflag [#allocation8], %s337
        %s339 = sand.u32 %s104, 1
        %s340 = smul.addr %s339, 64
        %s341 = scalar_lea.vmem [#allocation9], %s340
        %p342 = pneg %p117
        %p343 = pneg %p114
        %p344 = pneg %p138
        %p345 = pneg %p135
        %p346 = pneg %p159
        %p347 = pneg %p156
        %p348 = pneg %p185
        %p349 = pneg %p182
        %s350 = smul.u32 16, %s34
        %p351 = scmp.lt.s32.totalorder %s350, 31
        %s352 = scalar_select %p351, %s350, 31
        %s353 = smul.addr %s352, 4
        %s354 = scalar_lea.vmem %s6, %s353
        %s355 = smul.u32 16, %s34
        %s356 = smul.u32 16, %s35
        %s357 = smul.u32 16, %s34
        %s358 = smul.u32 16, %s34
        %p359 = scmp.lt.s32.totalorder %s358, 31
        %s360 = scalar_select %p359, %s358, 31
        %s361 = smul.addr %s360, 4
        %s362 = scalar_lea.vmem %s6, %s361
        %s363 = smul.u32 16, %s34
        %p365 = scmp.eq.s32.totalorder %s35, 0
        // Predicated region
        $region57: #{graphsage_forward.2} parent=39 // pred_check
          %p366 = pneg %p365
        $region58: #{graphsage_forward.2} parent=39 // pred_check_branch
          %368 = sbr.rel (%p366) target = $region60
        $region59: #{graphsage_forward.2} parent=39 // pred_region
          %369 = vst [vmem:[#allocation2] sm:$0xff] 0.0
          %370 = vst [vmem:[#allocation2 + $0x8] sm:$0xff] 0.0
          %371 = vst [vmem:[#allocation2 + $0x10] sm:$0xff] 0.0
          %372 = vst [vmem:[#allocation2 + $0x18] sm:$0xff] 0.0
          %373 = vst [vmem:[#allocation2 + $0x20] sm:$0xff] 0.0
          %374 = vst [vmem:[#allocation2 + $0x28] sm:$0xff] 0.0
          %375 = vst [vmem:[#allocation2 + $0x30] sm:$0xff] 0.0
          %376 = vst [vmem:[#allocation2 + $0x38] sm:$0xff] 0.0
          %377 = vst [vmem:[#allocation2 + $0x40] sm:$0xff] 0.0
          %378 = vst [vmem:[#allocation2 + $0x48] sm:$0xff] 0.0
          %379 = vst [vmem:[#allocation2 + $0x50] sm:$0xff] 0.0
          %380 = vst [vmem:[#allocation2 + $0x58] sm:$0xff] 0.0
          %381 = vst [vmem:[#allocation2 + $0x60] sm:$0xff] 0.0
          %382 = vst [vmem:[#allocation2 + $0x68] sm:$0xff] 0.0
          %383 = vst [vmem:[#allocation2 + $0x70] sm:$0xff] 0.0
          %384 = vst [vmem:[#allocation2 + $0x78] sm:$0xff] 0.0
        $region60: #{graphsage_forward.2} parent=39 // pred_fallthru
          _
        %s385 = smul.u32 %s34, 2
        %s386 = sadd.s32 %s385, %s35
        %s387 = sld [smem:[#allocation4 + %s386]]
        %p388 = scmp.ne.s32.totalorder %s387, 0
        // Predicated region
        $region61: #{graphsage_forward.2} parent=39 // pred_check
          %p389 = pneg %p388
        $region62: #{graphsage_forward.2} parent=39 // pred_check_branch
          %391 = sbr.rel (%p389) target = $region64
        $region63: #{graphsage_forward.2} parent=39 // pred_region
          %v392 = vld [vmem:[#allocation2] sm:$0xff]
          %v393 = vld [vmem:[#allocation2 + $0x8] sm:$0xff]
          %v394 = vld [vmem:[#allocation2 + $0x10] sm:$0xff]
          %v395 = vld [vmem:[#allocation2 + $0x18] sm:$0xff]
          %v396 = vld [vmem:[#allocation2 + $0x20] sm:$0xff]
          %v397 = vld [vmem:[#allocation2 + $0x28] sm:$0xff]
          %v398 = vld [vmem:[#allocation2 + $0x30] sm:$0xff]
          %v399 = vld [vmem:[#allocation2 + $0x38] sm:$0xff]
          %v400 = vld [vmem:[#allocation2 + $0x40] sm:$0xff]
          %v401 = vld [vmem:[#allocation2 + $0x48] sm:$0xff]
          %v402 = vld [vmem:[#allocation2 + $0x50] sm:$0xff]
          %v403 = vld [vmem:[#allocation2 + $0x58] sm:$0xff]
          %v404 = vld [vmem:[#allocation2 + $0x60] sm:$0xff]
          %v405 = vld [vmem:[#allocation2 + $0x68] sm:$0xff]
          %v406 = vld [vmem:[#allocation2 + $0x70] sm:$0xff]
          %v407 = vld [vmem:[#allocation2 + $0x78] sm:$0xff]
          %v408 = vld [vmem:[%s296] sm:$0xf]
          %v409 = vld [vmem:[%s296 + $0x4] sm:$0xf]
          %v410 = vld [vmem:[%s296 + $0x8] sm:$0xf]
          %v411 = vld [vmem:[%s296 + $0xc] sm:$0xf]
          %v412 = vld [vmem:[%s296 + $0x10] sm:$0xf]
          %v413 = vld [vmem:[%s296 + $0x14] sm:$0xf]
          %v414 = vld [vmem:[%s296 + $0x18] sm:$0xf]
          %v415 = vld [vmem:[%s296 + $0x1c] sm:$0xf]
          %v416 = vld [vmem:[%s296 + $0x20] sm:$0xf]
          %v417 = vld [vmem:[%s296 + $0x24] sm:$0xf]
          %v418 = vld [vmem:[%s296 + $0x28] sm:$0xf]
          %v419 = vld [vmem:[%s296 + $0x2c] sm:$0xf]
          %v420 = vld [vmem:[%s296 + $0x30] sm:$0xf]
          %v421 = vld [vmem:[%s296 + $0x34] sm:$0xf]
          %v422 = vld [vmem:[%s296 + $0x38] sm:$0xf]
          %v423 = vld [vmem:[%s296 + $0x3c] sm:$0xf]
          %v424 = vld [vmem:[%s305] sm:$0xf]
          %v425 = vld [vmem:[%s305 + $0x4] sm:$0xf]
          %v426 = vld [vmem:[%s305 + $0x8] sm:$0xf]
          %v427 = vld [vmem:[%s305 + $0xc] sm:$0xf]
          %v428 = vld [vmem:[%s305 + $0x10] sm:$0xf]
          %v429 = vld [vmem:[%s305 + $0x14] sm:$0xf]
          %v430 = vld [vmem:[%s305 + $0x18] sm:$0xf]
          %v431 = vld [vmem:[%s305 + $0x1c] sm:$0xf]
          %v432 = vld [vmem:[%s305 + $0x20] sm:$0xf]
          %v433 = vld [vmem:[%s305 + $0x24] sm:$0xf]
          %v434 = vld [vmem:[%s305 + $0x28] sm:$0xf]
          %v435 = vld [vmem:[%s305 + $0x2c] sm:$0xf]
          %v436 = vld [vmem:[%s305 + $0x30] sm:$0xf]
          %v437 = vld [vmem:[%s305 + $0x34] sm:$0xf]
          %v438 = vld [vmem:[%s305 + $0x38] sm:$0xf]
          %v439 = vld [vmem:[%s305 + $0x3c] sm:$0xf]
          %v456 = vunpack.c.l.b16 %v408
          %v457 = vunpack.c.l.b16 %v409
          %v458 = vunpack.c.l.b16 %v410
          %v459 = vunpack.c.l.b16 %v411
          %v460 = vunpack.c.l.b16 %v412
          %v461 = vunpack.c.l.b16 %v413
          %v462 = vunpack.c.l.b16 %v414
          %v463 = vunpack.c.l.b16 %v415
          %v464 = vunpack.c.l.b16 %v416
          %v465 = vunpack.c.l.b16 %v417
          %v466 = vunpack.c.l.b16 %v418
          %v467 = vunpack.c.l.b16 %v419
          %v468 = vunpack.c.l.b16 %v420
          %v469 = vunpack.c.l.b16 %v421
          %v470 = vunpack.c.l.b16 %v422
          %v471 = vunpack.c.l.b16 %v423
          %v472 = vpack.c.b16 %v457, %v456
          %v473 = vpack.c.b16 %v459, %v458
          %v474 = vpack.c.b16 %v461, %v460
          %v475 = vpack.c.b16 %v463, %v462
          %v476 = vpack.c.b16 %v465, %v464
          %v477 = vpack.c.b16 %v467, %v466
          %v478 = vpack.c.b16 %v469, %v468
          %v479 = vpack.c.b16 %v471, %v470
          %v504 = vunpack.c.l.b16 %v424
          %v505 = vunpack.c.l.b16 %v425
          %v506 = vunpack.c.l.b16 %v426
          %v507 = vunpack.c.l.b16 %v427
          %v508 = vunpack.c.l.b16 %v428
          %v509 = vunpack.c.l.b16 %v429
          %v510 = vunpack.c.l.b16 %v430
          %v511 = vunpack.c.l.b16 %v431
          %v512 = vunpack.c.l.b16 %v432
          %v513 = vunpack.c.l.b16 %v433
          %v514 = vunpack.c.l.b16 %v434
          %v515 = vunpack.c.l.b16 %v435
          %v516 = vunpack.c.l.b16 %v436
          %v517 = vunpack.c.l.b16 %v437
          %v518 = vunpack.c.l.b16 %v438
          %v519 = vunpack.c.l.b16 %v439
          %v520 = vpack.c.b16 %v505, %v504
          %v521 = vpack.c.b16 %v507, %v506
          %v522 = vpack.c.b16 %v509, %v508
          %v523 = vpack.c.b16 %v511, %v510
          %v524 = vpack.c.b16 %v513, %v512
          %v525 = vpack.c.b16 %v515, %v514
          %v526 = vpack.c.b16 %v517, %v516
          %v527 = vpack.c.b16 %v519, %v518
          %536 = vmatprep.subr.bf16.mxu0 0
          %537 = vmatpush1.bf16.msra.mxu0 %v520
          %538 = vmatprep.subr.bf16.mxu0 0
          %539 = vmatpush1.bf16.msra.mxu0 %v521
          %540 = vmatprep.subr.bf16.mxu0 0
          %541 = vmatpush1.bf16.msra.mxu0 %v522
          %542 = vmatprep.subr.bf16.mxu0 0
          %543 = vmatpush1.bf16.msra.mxu0 %v523
          %544 = vmatprep.subr.bf16.mxu0 0
          %545 = vmatpush1.bf16.msra.mxu0 %v524
          %546 = vmatprep.subr.bf16.mxu0 0
          %547 = vmatpush1.bf16.msra.mxu0 %v525
          %548 = vmatprep.subr.bf16.mxu0 0
          %549 = vmatpush1.bf16.msra.mxu0 %v526
          %550 = vmatprep.subr.bf16.mxu0 0
          %551 = vmatpush1.bf16.msra.mxu0 %v527
          %552 = vmatprep.subr.bf16.mxu0 0
          %553 = vmatpush1.bf16.msra.mxu0 0
          %554 = vmatprep.subr.bf16.mxu0 0
          %555 = vmatpush1.bf16.msra.mxu0 0
          %556 = vmatprep.subr.bf16.mxu0 0
          %557 = vmatpush1.bf16.msra.mxu0 0
          %558 = vmatprep.subr.bf16.mxu0 0
          %559 = vmatpush1.bf16.msra.mxu0 0
          %560 = vmatprep.subr.bf16.mxu0 0
          %561 = vmatpush1.bf16.msra.mxu0 0
          %562 = vmatprep.subr.bf16.mxu0 0
          %563 = vmatpush1.bf16.msra.mxu0 0
          %564 = vmatprep.subr.bf16.mxu0 0
          %565 = vmatpush1.bf16.msra.mxu0 0
          %566 = vmatprep.subr.bf16.mxu0 0
          %567 = vmatpush1.bf16.msra.mxu0 0
          %568 = vmatprep.mubr.bf16.mxu0 0
          %569 = vmatmul.mubr.bf16.gmra.mrb[0].mxu0 %v472
          %v570 = vpop.f32.mrb[0].mxu0
          %v571 = vadd.f32 0.0, %v570
          %v572 = vpop.f32.mrb[0].mxu0
          %v573 = vpop.f32.mrb[0].mxu0
          %v574 = vadd.f32 0.0, %v573
          %v575 = vpop.f32.mrb[0].mxu0
          %576 = vmatprep.mubr.bf16.mxu0 0
          %577 = vmatmul.mubr.bf16.gmra.mrb[0].mxu0 %v473
          %v578 = vpop.f32.mrb[0].mxu0
          %v579 = vadd.f32 0.0, %v578
          %v580 = vpop.f32.mrb[0].mxu0
          %v581 = vpop.f32.mrb[0].mxu0
          %v582 = vadd.f32 0.0, %v581
          %v583 = vpop.f32.mrb[0].mxu0
          %584 = vmatprep.mubr.bf16.mxu0 0
          %585 = vmatmul.mubr.bf16.gmra.mrb[0].mxu0 %v474
          %v586 = vpop.f32.mrb[0].mxu0
          %v587 = vadd.f32 0.0, %v586
          %v588 = vpop.f32.mrb[0].mxu0
          %v589 = vpop.f32.mrb[0].mxu0
          %v590 = vadd.f32 0.0, %v589
          %v591 = vpop.f32.mrb[0].mxu0
          %592 = vmatprep.mubr.bf16.mxu0 0
          %593 = vmatmul.mubr.bf16.gmra.mrb[0].mxu0 %v475
          %v594 = vpop.f32.mrb[0].mxu0
          %v595 = vadd.f32 0.0, %v594
          %v596 = vpop.f32.mrb[0].mxu0
          %v597 = vpop.f32.mrb[0].mxu0
          %v598 = vadd.f32 0.0, %v597
          %v599 = vpop.f32.mrb[0].mxu0
          %600 = vmatprep.mubr.bf16.mxu0 0
          %601 = vmatmul.mubr.bf16.gmra.mrb[0].mxu0 %v476
          %v602 = vpop.f32.mrb[0].mxu0
          %v603 = vadd.f32 0.0, %v602
          %v604 = vpop.f32.mrb[0].mxu0
          %v605 = vpop.f32.mrb[0].mxu0
          %v606 = vadd.f32 0.0, %v605
          %v607 = vpop.f32.mrb[0].mxu0
          %608 = vmatprep.mubr.bf16.mxu0 0
          %609 = vmatmul.mubr.bf16.gmra.mrb[0].mxu0 %v477
          %v610 = vpop.f32.mrb[0].mxu0
          %v611 = vadd.f32 0.0, %v610
          %v612 = vpop.f32.mrb[0].mxu0
          %v613 = vpop.f32.mrb[0].mxu0
          %v614 = vadd.f32 0.0, %v613
          %v615 = vpop.f32.mrb[0].mxu0
          %616 = vmatprep.mubr.bf16.mxu0 0
          %617 = vmatmul.mubr.bf16.gmra.mrb[0].mxu0 %v478
          %v618 = vpop.f32.mrb[0].mxu0
          %v619 = vadd.f32 0.0, %v618
          %v620 = vpop.f32.mrb[0].mxu0
          %v621 = vpop.f32.mrb[0].mxu0
          %v622 = vadd.f32 0.0, %v621
          %v623 = vpop.f32.mrb[0].mxu0
          %624 = vmatprep.mubr.bf16.mxu0 0
          %625 = vmatmul.mubr.bf16.gmra.mrb[0].mxu0 %v479
          %v626 = vpop.f32.mrb[0].mxu0
          %v627 = vadd.f32 0.0, %v626
          %v628 = vpop.f32.mrb[0].mxu0
          %v629 = vpop.f32.mrb[0].mxu0
          %v630 = vadd.f32 0.0, %v629
          %v631 = vpop.f32.mrb[0].mxu0
          %632 = vdwg.mxu0
          %v633 = vadd.f32 %v392, %v571
          %v634 = vadd.f32 %v393, %v574
          %v635 = vadd.f32 %v394, %v579
          %v636 = vadd.f32 %v395, %v582
          %v637 = vadd.f32 %v396, %v587
          %v638 = vadd.f32 %v397, %v590
          %v639 = vadd.f32 %v398, %v595
          %v640 = vadd.f32 %v399, %v598
          %v641 = vadd.f32 %v400, %v603
          %v642 = vadd.f32 %v401, %v606
          %v643 = vadd.f32 %v402, %v611
          %v644 = vadd.f32 %v403, %v614
          %v645 = vadd.f32 %v404, %v619
          %v646 = vadd.f32 %v405, %v622
          %v647 = vadd.f32 %v406, %v627
          %v648 = vadd.f32 %v407, %v630
          %649 = vst [vmem:[#allocation2] sm:$0xff] %v633
          %650 = vst [vmem:[#allocation2 + $0x8] sm:$0xff] %v634
          %651 = vst [vmem:[#allocation2 + $0x10] sm:$0xff] %v635
          %652 = vst [vmem:[#allocation2 + $0x18] sm:$0xff] %v636
          %653 = vst [vmem:[#allocation2 + $0x20] sm:$0xff] %v637
          %654 = vst [vmem:[#allocation2 + $0x28] sm:$0xff] %v638
          %655 = vst [vmem:[#allocation2 + $0x30] sm:$0xff] %v639
          %656 = vst [vmem:[#allocation2 + $0x38] sm:$0xff] %v640
          %657 = vst [vmem:[#allocation2 + $0x40] sm:$0xff] %v641
          %658 = vst [vmem:[#allocation2 + $0x48] sm:$0xff] %v642
          %659 = vst [vmem:[#allocation2 + $0x50] sm:$0xff] %v643
          %660 = vst [vmem:[#allocation2 + $0x58] sm:$0xff] %v644
          %661 = vst [vmem:[#allocation2 + $0x60] sm:$0xff] %v645
          %662 = vst [vmem:[#allocation2 + $0x68] sm:$0xff] %v646
          %663 = vst [vmem:[#allocation2 + $0x70] sm:$0xff] %v647
          %664 = vst [vmem:[#allocation2 + $0x78] sm:$0xff] %v648
        $region64: #{graphsage_forward.2} parent=39 // pred_fallthru
          _
        %p665 = scmp.eq.s32.totalorder %s35, 1
        // Predicated region
        $region65: #{graphsage_forward.2} parent=39 // pred_check
          %p666 = pneg %p665
        $region66: #{graphsage_forward.2} parent=39 // pred_check_branch
          %668 = sbr.rel (%p666) target = $region68
        $region67: #{graphsage_forward.2} parent=39 // pred_region
          %v669 = vld [vmem:[%s314] sm:$0xf]
          %v670 = vld [vmem:[%s314 + $0x4] sm:$0xf]
          %v671 = vld [vmem:[%s314 + $0x8] sm:$0xf]
          %v672 = vld [vmem:[%s314 + $0xc] sm:$0xf]
          %v673 = vld [vmem:[%s314 + $0x10] sm:$0xf]
          %v674 = vld [vmem:[%s314 + $0x14] sm:$0xf]
          %v675 = vld [vmem:[%s314 + $0x18] sm:$0xf]
          %v676 = vld [vmem:[%s314 + $0x1c] sm:$0xf]
          %v677 = vld [vmem:[%s314 + $0x20] sm:$0xf]
          %v678 = vld [vmem:[%s314 + $0x24] sm:$0xf]
          %v679 = vld [vmem:[%s314 + $0x28] sm:$0xf]
          %v680 = vld [vmem:[%s314 + $0x2c] sm:$0xf]
          %v681 = vld [vmem:[%s314 + $0x30] sm:$0xf]
          %v682 = vld [vmem:[%s314 + $0x34] sm:$0xf]
          %v683 = vld [vmem:[%s314 + $0x38] sm:$0xf]
          %v684 = vld [vmem:[%s314 + $0x3c] sm:$0xf]
          %v685 = vld [vmem:[#allocation2] sm:$0xff]
          %v686 = vld [vmem:[#allocation2 + $0x8] sm:$0xff]
          %v687 = vld [vmem:[#allocation2 + $0x10] sm:$0xff]
          %v688 = vld [vmem:[#allocation2 + $0x18] sm:$0xff]
          %v689 = vld [vmem:[#allocation2 + $0x20] sm:$0xff]
          %v690 = vld [vmem:[#allocation2 + $0x28] sm:$0xff]
          %v691 = vld [vmem:[#allocation2 + $0x30] sm:$0xff]
          %v692 = vld [vmem:[#allocation2 + $0x38] sm:$0xff]
          %v693 = vld [vmem:[#allocation2 + $0x40] sm:$0xff]
          %v694 = vld [vmem:[#allocation2 + $0x48] sm:$0xff]
          %v695 = vld [vmem:[#allocation2 + $0x50] sm:$0xff]
          %v696 = vld [vmem:[#allocation2 + $0x58] sm:$0xff]
          %v697 = vld [vmem:[#allocation2 + $0x60] sm:$0xff]
          %v698 = vld [vmem:[#allocation2 + $0x68] sm:$0xff]
          %v699 = vld [vmem:[#allocation2 + $0x70] sm:$0xff]
          %v700 = vld [vmem:[#allocation2 + $0x78] sm:$0xff]
          %v701 = vpack.c.bf16 %v686, %v685
          %v702 = vpack.c.bf16 %v688, %v687
          %v703 = vpack.c.bf16 %v690, %v689
          %v704 = vpack.c.bf16 %v692, %v691
          %v705 = vpack.c.bf16 %v694, %v693
          %v706 = vpack.c.bf16 %v696, %v695
          %v707 = vpack.c.bf16 %v698, %v697
          %v708 = vpack.c.bf16 %v700, %v699
          %v725 = vunpack.c.l.b16 %v669
          %v726 = vunpack.c.l.b16 %v670
          %v727 = vunpack.c.l.b16 %v671
          %v728 = vunpack.c.l.b16 %v672
          %v729 = vunpack.c.l.b16 %v673
          %v730 = vunpack.c.l.b16 %v674
          %v731 = vunpack.c.l.b16 %v675
          %v732 = vunpack.c.l.b16 %v676
          %v733 = vunpack.c.l.b16 %v677
          %v734 = vunpack.c.l.b16 %v678
          %v735 = vunpack.c.l.b16 %v679
          %v736 = vunpack.c.l.b16 %v680
          %v737 = vunpack.c.l.b16 %v681
          %v738 = vunpack.c.l.b16 %v682
          %v739 = vunpack.c.l.b16 %v683
          %v740 = vunpack.c.l.b16 %v684
          %v741 = vpack.c.b16 %v726, %v725
          %v742 = vpack.c.b16 %v728, %v727
          %v743 = vpack.c.b16 %v730, %v729
          %v744 = vpack.c.b16 %v732, %v731
          %v745 = vpack.c.b16 %v734, %v733
          %v746 = vpack.c.b16 %v736, %v735
          %v747 = vpack.c.b16 %v738, %v737
          %v748 = vpack.c.b16 %v740, %v739
          %v757 = vld [vmem:[#allocation10] sm:$0xf]
          %v758 = vld [vmem:[#allocation10 + $0x4] sm:$0xf]
          %v759 = vld [vmem:[#allocation10 + $0x8] sm:$0xf]
          %v760 = vld [vmem:[#allocation10 + $0xc] sm:$0xf]
          %v761 = vld [vmem:[#allocation10 + $0x10] sm:$0xf]
          %v762 = vld [vmem:[#allocation10 + $0x14] sm:$0xf]
          %v763 = vld [vmem:[#allocation10 + $0x18] sm:$0xf]
          %v764 = vld [vmem:[#allocation10 + $0x1c] sm:$0xf]
          %v765 = vld [vmem:[#allocation10 + $0x20] sm:$0xf]
          %v766 = vld [vmem:[#allocation10 + $0x24] sm:$0xf]
          %v767 = vld [vmem:[#allocation10 + $0x28] sm:$0xf]
          %v768 = vld [vmem:[#allocation10 + $0x2c] sm:$0xf]
          %v769 = vld [vmem:[#allocation10 + $0x30] sm:$0xf]
          %v770 = vld [vmem:[#allocation10 + $0x34] sm:$0xf]
          %v771 = vld [vmem:[#allocation10 + $0x38] sm:$0xf]
          %v772 = vld [vmem:[#allocation10 + $0x3c] sm:$0xf]
          %v773 = vld [vmem:[#allocation10 + $0x40] sm:$0xf]
          %v774 = vld [vmem:[#allocation10 + $0x44] sm:$0xf]
          %v775 = vld [vmem:[#allocation10 + $0x48] sm:$0xf]
          %v776 = vld [vmem:[#allocation10 + $0x4c] sm:$0xf]
          %v777 = vld [vmem:[#allocation10 + $0x50] sm:$0xf]
          %v778 = vld [vmem:[#allocation10 + $0x54] sm:$0xf]
          %v779 = vld [vmem:[#allocation10 + $0x58] sm:$0xf]
          %v780 = vld [vmem:[#allocation10 + $0x5c] sm:$0xf]
          %v781 = vld [vmem:[#allocation10 + $0x60] sm:$0xf]
          %v782 = vld [vmem:[#allocation10 + $0x64] sm:$0xf]
          %v783 = vld [vmem:[#allocation10 + $0x68] sm:$0xf]
          %v784 = vld [vmem:[#allocation10 + $0x6c] sm:$0xf]
          %v785 = vld [vmem:[#allocation10 + $0x70] sm:$0xf]
          %v786 = vld [vmem:[#allocation10 + $0x74] sm:$0xf]
          %v787 = vld [vmem:[#allocation10 + $0x78] sm:$0xf]
          %v788 = vld [vmem:[#allocation10 + $0x7c] sm:$0xf]
          %v789 = vld [vmem:[%s5] sm:$0x1]
          %v791 = vlaneseq
          %v792 = vshrl.u32 %v791, 7
          %v793 = vsub.s32 0, %v792
          %v794 = vrot.slane %v789, %v793
          %v828 = vunpack.c.l.b16 %v757
          %v829 = vunpack.c.l.b16 %v758
          %v830 = vunpack.c.l.b16 %v759
          %v831 = vunpack.c.l.b16 %v760
          %v832 = vunpack.c.l.b16 %v761
          %v833 = vunpack.c.l.b16 %v762
          %v834 = vunpack.c.l.b16 %v763
          %v835 = vunpack.c.l.b16 %v764
          %v836 = vunpack.c.l.b16 %v765
          %v837 = vunpack.c.l.b16 %v766
          %v838 = vunpack.c.l.b16 %v767
          %v839 = vunpack.c.l.b16 %v768
          %v840 = vunpack.c.l.b16 %v769
          %v841 = vunpack.c.l.b16 %v770
          %v842 = vunpack.c.l.b16 %v771
          %v843 = vunpack.c.l.b16 %v772
          %v844 = vunpack.c.l.b16 %v773
          %v845 = vunpack.c.l.b16 %v774
          %v846 = vunpack.c.l.b16 %v775
          %v847 = vunpack.c.l.b16 %v776
          %v848 = vunpack.c.l.b16 %v777
          %v849 = vunpack.c.l.b16 %v778
          %v850 = vunpack.c.l.b16 %v779
          %v851 = vunpack.c.l.b16 %v780
          %v852 = vunpack.c.l.b16 %v781
          %v853 = vunpack.c.l.b16 %v782
          %v854 = vunpack.c.l.b16 %v783
          %v855 = vunpack.c.l.b16 %v784
          %v856 = vunpack.c.l.b16 %v785
          %v857 = vunpack.c.l.b16 %v786
          %v858 = vunpack.c.l.b16 %v787
          %v859 = vunpack.c.l.b16 %v788
          %v860 = vpack.c.b16 %v829, %v828
          %v861 = vpack.c.b16 %v831, %v830
          %v862 = vpack.c.b16 %v833, %v832
          %v863 = vpack.c.b16 %v835, %v834
          %v864 = vpack.c.b16 %v837, %v836
          %v865 = vpack.c.b16 %v839, %v838
          %v866 = vpack.c.b16 %v841, %v840
          %v867 = vpack.c.b16 %v843, %v842
          %v868 = vpack.c.b16 %v845, %v844
          %v869 = vpack.c.b16 %v847, %v846
          %v870 = vpack.c.b16 %v849, %v848
          %v871 = vpack.c.b16 %v851, %v850
          %v872 = vpack.c.b16 %v853, %v852
          %v873 = vpack.c.b16 %v855, %v854
          %v874 = vpack.c.b16 %v857, %v856
          %v875 = vpack.c.b16 %v859, %v858
          %892 = vmatprep.subr.bf16.mxu0 0
          %893 = vmatpush1.bf16.msra.mxu0 %v860
          %894 = vmatprep.subr.bf16.mxu0 0
          %895 = vmatpush1.bf16.msra.mxu0 %v861
          %896 = vmatprep.subr.bf16.mxu0 0
          %897 = vmatpush1.bf16.msra.mxu0 %v862
          %898 = vmatprep.subr.bf16.mxu0 0
          %899 = vmatpush1.bf16.msra.mxu0 %v863
          %900 = vmatprep.subr.bf16.mxu0 0
          %901 = vmatpush1.bf16.msra.mxu0 %v864
          %902 = vmatprep.subr.bf16.mxu0 0
          %903 = vmatpush1.bf16.msra.mxu0 %v865
          %904 = vmatprep.subr.bf16.mxu0 0
          %905 = vmatpush1.bf16.msra.mxu0 %v866
          %906 = vmatprep.subr.bf16.mxu0 0
          %907 = vmatpush1.bf16.msra.mxu0 %v867
          %908 = vmatprep.subr.bf16.mxu0 0
          %909 = vmatpush1.bf16.msra.mxu0 %v868
          %910 = vmatprep.subr.bf16.mxu0 0
          %911 = vmatpush1.bf16.msra.mxu0 %v869
          %912 = vmatprep.subr.bf16.mxu0 0
          %913 = vmatpush1.bf16.msra.mxu0 %v870
          %914 = vmatprep.subr.bf16.mxu0 0
          %915 = vmatpush1.bf16.msra.mxu0 %v871
          %916 = vmatprep.subr.bf16.mxu0 0
          %917 = vmatpush1.bf16.msra.mxu0 %v872
          %918 = vmatprep.subr.bf16.mxu0 0
          %919 = vmatpush1.bf16.msra.mxu0 %v873
          %920 = vmatprep.subr.bf16.mxu0 0
          %921 = vmatpush1.bf16.msra.mxu0 %v874
          %922 = vmatprep.subr.bf16.mxu0 0
          %923 = vmatpush1.bf16.msra.mxu0 %v875
          %924 = vmatprep.mubr.bf16.mxu0 %v701
          %925 = vmatmul.mubr.bf16.gmra.mrb[0].mxu0 %v741
          %v926 = vpop.f32.mrb[0].mxu0
          %v927 = vadd.f32 %v794, %v926
          %v928 = vpop.f32.mrb[0].mxu0
          %v929 = vpop.f32.mrb[0].mxu0
          %v930 = vadd.f32 %v794, %v929
          %v931 = vpop.f32.mrb[0].mxu0
          %932 = vmatprep.mubr.bf16.mxu0 %v702
          %933 = vmatmul.mubr.bf16.gmra.mrb[0].mxu0 %v742
          %v934 = vpop.f32.mrb[0].mxu0
          %v935 = vadd.f32 %v794, %v934
          %v936 = vpop.f32.mrb[0].mxu0
          %v937 = vpop.f32.mrb[0].mxu0
          %v938 = vadd.f32 %v794, %v937
          %v939 = vpop.f32.mrb[0].mxu0
          %940 = vmatprep.mubr.bf16.mxu0 %v703
          %941 = vmatmul.mubr.bf16.gmra.mrb[0].mxu0 %v743
          %v942 = vpop.f32.mrb[0].mxu0
          %v943 = vadd.f32 %v794, %v942
          %v944 = vpop.f32.mrb[0].mxu0
          %v945 = vpop.f32.mrb[0].mxu0
          %v946 = vadd.f32 %v794, %v945
          %v947 = vpop.f32.mrb[0].mxu0
          %948 = vmatprep.mubr.bf16.mxu0 %v704
          %949 = vmatmul.mubr.bf16.gmra.mrb[0].mxu0 %v744
          %v950 = vpop.f32.mrb[0].mxu0
          %v951 = vadd.f32 %v794, %v950
          %v952 = vpop.f32.mrb[0].mxu0
          %v953 = vpop.f32.mrb[0].mxu0
          %v954 = vadd.f32 %v794, %v953
          %v955 = vpop.f32.mrb[0].mxu0
          %956 = vmatprep.mubr.bf16.mxu0 %v705
          %957 = vmatmul.mubr.bf16.gmra.mrb[0].mxu0 %v745
          %v958 = vpop.f32.mrb[0].mxu0
          %v959 = vadd.f32 %v794, %v958
          %v960 = vpop.f32.mrb[0].mxu0
          %v961 = vpop.f32.mrb[0].mxu0
          %v962 = vadd.f32 %v794, %v961
          %v963 = vpop.f32.mrb[0].mxu0
          %964 = vmatprep.mubr.bf16.mxu0 %v706
          %965 = vmatmul.mubr.bf16.gmra.mrb[0].mxu0 %v746
          %v966 = vpop.f32.mrb[0].mxu0
          %v967 = vadd.f32 %v794, %v966
          %v968 = vpop.f32.mrb[0].mxu0
          %v969 = vpop.f32.mrb[0].mxu0
          %v970 = vadd.f32 %v794, %v969
          %v971 = vpop.f32.mrb[0].mxu0
          %972 = vmatprep.mubr.bf16.mxu0 %v707
          %973 = vmatmul.mubr.bf16.gmra.mrb[0].mxu0 %v747
          %v974 = vpop.f32.mrb[0].mxu0
          %v975 = vadd.f32 %v794, %v974
          %v976 = vpop.f32.mrb[0].mxu0
          %v977 = vpop.f32.mrb[0].mxu0
          %v978 = vadd.f32 %v794, %v977
          %v979 = vpop.f32.mrb[0].mxu0
          %980 = vmatprep.mubr.bf16.mxu0 %v708
          %981 = vmatmul.mubr.bf16.gmra.mrb[0].mxu0 %v748
          %v982 = vpop.f32.mrb[0].mxu0
          %v983 = vadd.f32 %v794, %v982
          %v984 = vpop.f32.mrb[0].mxu0
          %v985 = vpop.f32.mrb[0].mxu0
          %v986 = vadd.f32 %v794, %v985
          %v987 = vpop.f32.mrb[0].mxu0
          %988 = vdwg.mxu0
          %v989 = vmax.f32 %v927, 0.0
          %v990 = vmax.f32 %v930, 0.0
          %v991 = vmax.f32 %v935, 0.0
          %v992 = vmax.f32 %v938, 0.0
          %v993 = vmax.f32 %v943, 0.0
          %v994 = vmax.f32 %v946, 0.0
          %v995 = vmax.f32 %v951, 0.0
          %v996 = vmax.f32 %v954, 0.0
          %v997 = vmax.f32 %v959, 0.0
          %v998 = vmax.f32 %v962, 0.0
          %v999 = vmax.f32 %v967, 0.0
          %v1000 = vmax.f32 %v970, 0.0
          %v1001 = vmax.f32 %v975, 0.0
          %v1002 = vmax.f32 %v978, 0.0
          %v1003 = vmax.f32 %v983, 0.0
          %v1004 = vmax.f32 %v986, 0.0
          %v1005 = vpack.c.bf16 %v990, %v989
          %v1006 = vpack.c.bf16 %v992, %v991
          %v1007 = vpack.c.bf16 %v994, %v993
          %v1008 = vpack.c.bf16 %v996, %v995
          %v1009 = vpack.c.bf16 %v998, %v997
          %v1010 = vpack.c.bf16 %v1000, %v999
          %v1011 = vpack.c.bf16 %v1002, %v1001
          %v1012 = vpack.c.bf16 %v1004, %v1003
          %v1021 = vunpack.c.l.b16 %v1005
          %v1022 = vunpack.c.h.b16 %v1005
          %v1023 = vunpack.c.l.b16 %v1006
          %v1024 = vunpack.c.h.b16 %v1006
          %v1025 = vunpack.c.l.b16 %v1007
          %v1026 = vunpack.c.h.b16 %v1007
          %v1027 = vunpack.c.l.b16 %v1008
          %v1028 = vunpack.c.h.b16 %v1008
          %v1029 = vunpack.c.l.b16 %v1009
          %v1030 = vunpack.c.h.b16 %v1009
          %v1031 = vunpack.c.l.b16 %v1010
          %v1032 = vunpack.c.h.b16 %v1010
          %v1033 = vunpack.c.l.b16 %v1011
          %v1034 = vunpack.c.h.b16 %v1011
          %v1035 = vunpack.c.l.b16 %v1012
          %v1036 = vunpack.c.h.b16 %v1012
          %v1037 = vpack.c.b16 %v1021, %v1021
          %v1038 = vpack.c.b16 %v1022, %v1022
          %v1039 = vpack.c.b16 %v1023, %v1023
          %v1040 = vpack.c.b16 %v1024, %v1024
          %v1041 = vpack.c.b16 %v1025, %v1025
          %v1042 = vpack.c.b16 %v1026, %v1026
          %v1043 = vpack.c.b16 %v1027, %v1027
          %v1044 = vpack.c.b16 %v1028, %v1028
          %v1045 = vpack.c.b16 %v1029, %v1029
          %v1046 = vpack.c.b16 %v1030, %v1030
          %v1047 = vpack.c.b16 %v1031, %v1031
          %v1048 = vpack.c.b16 %v1032, %v1032
          %v1049 = vpack.c.b16 %v1033, %v1033
          %v1050 = vpack.c.b16 %v1034, %v1034
          %v1051 = vpack.c.b16 %v1035, %v1035
          %v1052 = vpack.c.b16 %v1036, %v1036
          %1069 = vst [vmem:[%s362] sm:$0xf] %v1037
          %1070 = vst [vmem:[%s362 + $0x4] sm:$0xf] %v1038
          %1071 = vst [vmem:[%s362 + $0x8] sm:$0xf] %v1039
          %1072 = vst [vmem:[%s362 + $0xc] sm:$0xf] %v1040
          %1073 = vst [vmem:[%s362 + $0x10] sm:$0xf] %v1041
          %1074 = vst [vmem:[%s362 + $0x14] sm:$0xf] %v1042
          %1075 = vst [vmem:[%s362 + $0x18] sm:$0xf] %v1043
          %1076 = vst [vmem:[%s362 + $0x1c] sm:$0xf] %v1044
          %1077 = vst [vmem:[%s362 + $0x20] sm:$0xf] %v1045
          %1078 = vst [vmem:[%s362 + $0x24] sm:$0xf] %v1046
          %1079 = vst [vmem:[%s362 + $0x28] sm:$0xf] %v1047
          %1080 = vst [vmem:[%s362 + $0x2c] sm:$0xf] %v1048
          %1081 = vst [vmem:[%s362 + $0x30] sm:$0xf] %v1049
          %1082 = vst [vmem:[%s362 + $0x34] sm:$0xf] %v1050
          %1083 = vst [vmem:[%s362 + $0x38] sm:$0xf] %v1051
          %1084 = vst [vmem:[%s362 + $0x3c] sm:$0xf] %v1052
        $region68: #{graphsage_forward.2} parent=39 // pred_fallthru
          _
        %s1085 = smul.u32 16, %s34
        %p1086 = scmp.lt.s32.totalorder %s1085, 31
        %s1087 = scalar_select %p1086, %s1085, 31
        %s1088 = smul.addr %s1087, 4
        %s1089 = scalar_lea.vmem %s6, %s1088
        // Predicated region
        $region69: #{graphsage_forward.2} parent=39 // pred_check
          %p1090 = pneg %p182
        $region70: #{graphsage_forward.2} parent=39 // pred_check_branch
          %1092 = sbr.rel (%p1090) target = $region72
        $region71: #{graphsage_forward.2} parent=39 // pred_region
          %s1093 = smul.u32 16, %s34
        $region72: #{graphsage_forward.2} parent=39 // pred_fallthru
          _
      $region40: #{graphsage_forward.2} parent=5 // pred_fallthru
        _
      %p1094 = scmp.le.s32.totalorder 2, %s25
      // Predicated region
      $region73: #{graphsage_forward.2} parent=5 // pred_check
        %p1095 = pneg %p1094
      $region74: #{graphsage_forward.2} parent=5 // pred_check_branch
        %1097 = sbr.rel (%p1095) target = $region76
      $region75: #{graphsage_forward.2} parent=5 // pred_region
        %s1098 = ssub.s32 %s25, 2
        // Predicated region
        $region77: #{graphsage_forward.2} parent=75 // pred_check
          %p1099 = pneg %p188
        $region78: #{graphsage_forward.2} parent=75 // pred_check_branch
          %1101 = sbr.rel (%p1099) target = $region80
        $region79: #{graphsage_forward.2} parent=75 // pred_region
          %s1102 = smul.u32 16, %s36
          %p1103 = scmp.lt.s32.totalorder %s1102, 31
          %s1104 = scalar_select %p1103, %s1102, 31
          %s1105 = smul.addr %s1104, 4
          %s1106 = scalar_lea.vmem %s6, %s1105
        $region80: #{graphsage_forward.2} parent=75 // pred_fallthru
          _
      $region76: #{graphsage_forward.2} parent=5 // pred_fallthru
        _
    $region6: #{graphsage_forward.2} parent=1 // loop_footer
      %s29 = sadd.s32 1, %s25
    $region7: #{graphsage_forward.2} parent=1 // loop_footer_branch
      %24 = sbr.rel target = $region3
    $region8: #{graphsage_forward.2} parent=1 // loop_exit
      _
    %1107 = vsyncpa [#allocation6], 1
    %s1108 = scalar_lea.sflag [#allocation6], 1
    %1109 = vsyncpa %s1108, 1
    %1110 = vsyncpa [#allocation8], 1
    %s1111 = scalar_lea.sflag [#allocation8], 1
    %1112 = vsyncpa %s1111, 1
    %1113 = vsyncpa [#allocation11], 1

// kernel: graphsage_forward.3
$region0: #{graphsage_forward.3}
  #allocation0 [shape = 'u32[]', space=smem, size = 0x4, offset = 0x4, fixed_abs, tag = 'smem constant byte address 0x4 - core index']
  #allocation1 [shape = 'u32[144,128]{1,0:T(1,128)}', space=vmem, size = 0x12000, scoped, tag = 'internal scratch']
  #allocation2 [shape = 'f32[128,128]{1,0:T(8,128)}', space=vmem, size = 0x10000, scoped, tag = 'scratch operand']
  #allocation3 [shape = 's32[1]{0}', space=sflag, size = 0x4, scoped, tag = 'scoped memory for graphsage_forward.3']
  #allocation4 [shape = 'u8[512]{0}', space=smem, size = 0x200, scoped, tag = 'prefetched SMEM operand 0']
  %s0 = inlined_call_operand.vmem [shape: s32[4], index: 0, kind: input, shape index: {}]
  %s1 = inlined_call_operand.vmem [shape: bf16[256,256], index: 1, kind: input, shape index: {}]
  %s2 = inlined_call_operand.vmem [shape: bf16[256,128], index: 2, kind: input, shape index: {}, may-alias: {2,3}]
  %s3 = inlined_call_operand.vmem [shape: bf16[256,128], index: 3, kind: input, shape index: {}, may-alias: {2,3}]
  %s4 = inlined_call_operand.vmem [shape: bf16[256,128], index: 4, kind: input, shape index: {}]
  %s5 = inlined_call_operand.vmem [shape: f32[1,128], index: 5, kind: input, shape index: {}]
  %s6 = inlined_call_operand.hbm [shape: f32[256,128], index: 6, kind: output, shape index: {}]
  %s7 = sld [smem:[#allocation0]]
  $region106: #{graphsage_forward.3} parent=0
    _
  %s9 = ssub.s32 1, %s7
  %s10 = scalar_select 0, %s9, %s7
  %s11 = sshll.u32 %s0, 4
  %s12 = int_to_ptr.vmem [resolvable:$true] %s11
  %14 = dma.vmem_to_smem %s12, 16, [#allocation4], [#allocation3]
  %15 = dma.done [#allocation3], 16
  %16 = sfence
  $region1: #{graphsage_forward.3} parent=0
    #allocation5 [shape = 'u8[65536]{0}', space=vmem, size = 0x10000, scoped, tag = 'input window, operand 1']
    #allocation6 [shape = 'u8[131072]{0}', space=vmem, size = 0x20000, scoped, tag = 'output window, operand 0']
    #allocation7 [shape = 's32[2]{0}', space=sflag, size = 0x8, scoped, tag = 'scoped memory for graphsage_forward.3']
    %17 = vsyncpa [#allocation7], 0
    %s18 = scalar_lea.sflag [#allocation7], 1
    %19 = vsyncpa %s18, 0
    loop: start=0, step=1, limit=6
    $region2: #{graphsage_forward.3} parent=1 // loop_pre_header
      _
    $region3: #{graphsage_forward.3} parent=1 // loop_header
      %s21 = sphi 0, %s25
      %p22 = scmp.ge.s32.totalorder %s21, 6
      %s28 = sphi 0, %s40
      %s29 = sphi 0, %s36
      %s30 = sphi 0, %s28
      %s31 = sphi 0, %s29
      %s32 = sphi 0, %s30
      %s33 = sphi 0, %s31
      %s45 = sphi 0, %s47
      %s48 = sphi 0, %s45
      %s49 = sphi 0, %s48
      %s65 = sphi 0, %s49
      %s71 = sphi 0, %s73
      %s74 = sphi 0, %s71
      %s75 = sphi 0, %s74
      %s91 = sphi 0, %s75
      %s97 = sphi 0, %s99
      %s100 = sphi 0, %s97
      %s101 = sphi 0, %s100
      %s117 = sphi 0, %s101
      %s121 = sphi 0, %s121
      %s123 = sphi 0, %s121
      %s124 = sphi 0, %s123
      %s138 = sphi 0, %s124
      %s142 = sphi 0, %s142
      %s144 = sphi 0, %s142
      %s145 = sphi 0, %s144
      %s159 = sphi 0, %s145
      %s165 = sphi 0, %s167
      %s168 = sphi 0, %s165
      %s169 = sphi 0, %s168
      %s185 = sphi 0, %s169
    $region4: #{graphsage_forward.3} parent=1 // loop_header_branch
      %24 = sbr.rel (%p22) target = $region8
    $region5: #{graphsage_forward.3} parent=1 // loop_body
      %s26 = ssub.s32 %s21, 1
      %s27 = ssub.s32 %s21, 2
      %s34 = sadd.s32 1, %s29
      %p35 = scmp.ge.s32.totalorder %s34, 2
      %s36 = scalar_select %p35, 0, %s34
      %s37 = sadd.s32 1, %s28
      %s38 = scalar_select %p35, %s37, %s28
      %p39 = scmp.ge.s32.totalorder %s38, 2
      %s40 = scalar_select %p39, 0, %s38
      %s41 = ssub.s32 %s28, %s40
      %s42 = ssub.s32 %s29, %s36
      %s43 = sor.u32 %s41, %s42
      %p44 = scmp.eq.s32.totalorder %s43, 0
      %s46 = sadd.s32 %s45, 1
      %s47 = scalar_select %p44, %s45, %s46
      %p50 = pneg %p44
      %p51 = scmp.eq.s32.totalorder %s21, 3
      %p52 = por %p50, %p51
      %p53 = scmp.ne.s32.totalorder %s45, %s48
      %p54 = scmp.eq.s32.totalorder %s21, 0
      %p55 = por %p53, %p54
      %p56 = scmp.ne.s32.totalorder %s45, %s48
      %p57 = scmp.eq.s32.totalorder %s26, 3
      %p58 = por %p56, %p57
      %p59 = scmp.ne.s32.totalorder %s48, %s49
      %p60 = scmp.eq.s32.totalorder %s26, 0
      %p61 = por %p59, %p60
      %p62 = scmp.ne.s32.totalorder %s48, %s49
      %p63 = scmp.eq.s32.totalorder %s27, 3
      %p64 = por %p62, %p63
      %p66 = scmp.ne.s32.totalorder %s49, %s65
      %p67 = scmp.eq.s32.totalorder %s27, 0
      %p68 = por %p66, %p67
      %s69 = ssub.s32 %s29, %s36
      %p70 = scmp.eq.s32.totalorder %s69, 0
      %s72 = sadd.s32 %s71, 1
      %s73 = scalar_select %p70, %s71, %s72
      %p76 = pneg %p70
      %p77 = scmp.eq.s32.totalorder %s21, 3
      %p78 = por %p76, %p77
      %p79 = scmp.ne.s32.totalorder %s71, %s74
      %p80 = scmp.eq.s32.totalorder %s21, 0
      %p81 = por %p79, %p80
      %p82 = scmp.ne.s32.totalorder %s71, %s74
      %p83 = scmp.eq.s32.totalorder %s26, 3
      %p84 = por %p82, %p83
      %p85 = scmp.ne.s32.totalorder %s74, %s75
      %p86 = scmp.eq.s32.totalorder %s26, 0
      %p87 = por %p85, %p86
      %p88 = scmp.ne.s32.totalorder %s74, %s75
      %p89 = scmp.eq.s32.totalorder %s27, 3
      %p90 = por %p88, %p89
      %p92 = scmp.ne.s32.totalorder %s75, %s91
      %p93 = scmp.eq.s32.totalorder %s27, 0
      %p94 = por %p92, %p93
      %s95 = ssub.s32 %s28, %s40
      %p96 = scmp.eq.s32.totalorder %s95, 0
      %s98 = sadd.s32 %s97, 1
      %s99 = scalar_select %p96, %s97, %s98
      %p102 = pneg %p96
      %p103 = scmp.eq.s32.totalorder %s21, 3
      %p104 = por %p102, %p103
      %p105 = scmp.ne.s32.totalorder %s97, %s100
      %p106 = scmp.eq.s32.totalorder %s21, 0
      %p107 = por %p105, %p106
      %p108 = scmp.ne.s32.totalorder %s97, %s100
      %p109 = scmp.eq.s32.totalorder %s26, 3
      %p110 = por %p108, %p109
      %p111 = scmp.ne.s32.totalorder %s100, %s101
      %p112 = scmp.eq.s32.totalorder %s26, 0
      %p113 = por %p111, %p112
      %p114 = scmp.ne.s32.totalorder %s100, %s101
      %p115 = scmp.eq.s32.totalorder %s27, 3
      %p116 = por %p114, %p115
      %p118 = scmp.ne.s32.totalorder %s101, %s117
      %p119 = scmp.eq.s32.totalorder %s27, 0
      %p120 = por %p118, %p119
      %s122 = sadd.s32 %s121, 1
      %p125 = scmp.eq.s32.totalorder %s21, 3
      %p126 = scmp.ne.s32.totalorder %s121, %s123
      %p127 = scmp.eq.s32.totalorder %s21, 0
      %p128 = por %p126, %p127
      %p129 = scmp.ne.s32.totalorder %s121, %s123
      %p130 = scmp.eq.s32.totalorder %s26, 3
      %p131 = por %p129, %p130
      %p132 = scmp.ne.s32.totalorder %s123, %s124
      %p133 = scmp.eq.s32.totalorder %s26, 0
      %p134 = por %p132, %p133
      %p135 = scmp.ne.s32.totalorder %s123, %s124
      %p136 = scmp.eq.s32.totalorder %s27, 3
      %p137 = por %p135, %p136
      %p139 = scmp.ne.s32.totalorder %s124, %s138
      %p140 = scmp.eq.s32.totalorder %s27, 0
      %p141 = por %p139, %p140
      %s143 = sadd.s32 %s142, 1
      %p146 = scmp.eq.s32.totalorder %s21, 3
      %p147 = scmp.ne.s32.totalorder %s142, %s144
      %p148 = scmp.eq.s32.totalorder %s21, 0
      %p149 = por %p147, %p148
      %p150 = scmp.ne.s32.totalorder %s142, %s144
      %p151 = scmp.eq.s32.totalorder %s26, 3
      %p152 = por %p150, %p151
      %p153 = scmp.ne.s32.totalorder %s144, %s145
      %p154 = scmp.eq.s32.totalorder %s26, 0
      %p155 = por %p153, %p154
      %p156 = scmp.ne.s32.totalorder %s144, %s145
      %p157 = scmp.eq.s32.totalorder %s27, 3
      %p158 = por %p156, %p157
      %p160 = scmp.ne.s32.totalorder %s145, %s159
      %p161 = scmp.eq.s32.totalorder %s27, 0
      %p162 = por %p160, %p161
      %s163 = ssub.s32 %s28, %s40
      %p164 = scmp.eq.s32.totalorder %s163, 0
      %s166 = sadd.s32 %s165, 1
      %s167 = scalar_select %p164, %s165, %s166
      %p170 = pneg %p164
      %p171 = scmp.eq.s32.totalorder %s21, 3
      %p172 = por %p170, %p171
      %p173 = scmp.ne.s32.totalorder %s165, %s168
      %p174 = scmp.eq.s32.totalorder %s21, 0
      %p175 = por %p173, %p174
      %p176 = scmp.ne.s32.totalorder %s165, %s168
      %p177 = scmp.eq.s32.totalorder %s26, 3
      %p178 = por %p176, %p177
      %p179 = scmp.ne.s32.totalorder %s168, %s169
      %p180 = scmp.eq.s32.totalorder %s26, 0
      %p181 = por %p179, %p180
      %p182 = scmp.ne.s32.totalorder %s168, %s169
      %p183 = scmp.eq.s32.totalorder %s27, 3
      %p184 = por %p182, %p183
      %p186 = scmp.ne.s32.totalorder %s169, %s185
      %p187 = scmp.eq.s32.totalorder %s27, 0
      %p188 = por %p186, %p187
      %p189 = scmp.le.s32.totalorder 1, %s21
      %p190 = scmp.lt.s32.totalorder %s21, 5
      %p191 = pnand %p189, %p190
      %p192 = pneg %p191
      // Predicated region
      $region9: #{graphsage_forward.3} parent=5 // pred_check
        _
      $region10: #{graphsage_forward.3} parent=5 // pred_check_branch
        %194 = sbr.rel (%p191) target = $region12
      $region11: #{graphsage_forward.3} parent=5 // pred_region
        %s195 = ssub.s32 %s21, 1
        // Predicated region
        $region13: #{graphsage_forward.3} parent=11 // pred_check
          %p196 = pneg %p134
        $region14: #{graphsage_forward.3} parent=11 // pred_check_branch
          %198 = sbr.rel (%p196) target = $region16
        $region15: #{graphsage_forward.3} parent=11 // pred_region
          _
        $region16: #{graphsage_forward.3} parent=11 // pred_fallthru
          _
        // Predicated region
        $region17: #{graphsage_forward.3} parent=11 // pred_check
          %p199 = pneg %p155
        $region18: #{graphsage_forward.3} parent=11 // pred_check_branch
          %201 = sbr.rel (%p199) target = $region20
        $region19: #{graphsage_forward.3} parent=11 // pred_region
          _
        $region20: #{graphsage_forward.3} parent=11 // pred_fallthru
          _
      $region12: #{graphsage_forward.3} parent=5 // pred_fallthru
        _
      %p202 = scmp.lt.s32.totalorder %s21, 4
      // Predicated region
      $region21: #{graphsage_forward.3} parent=5 // pred_check
        %p203 = pneg %p202
      $region22: #{graphsage_forward.3} parent=5 // pred_check_branch
        %205 = sbr.rel (%p203) target = $region24
      $region23: #{graphsage_forward.3} parent=5 // pred_region
        // Predicated region
        $region25: #{graphsage_forward.3} parent=23 // pred_check
          %p206 = pneg %p55
        $region26: #{graphsage_forward.3} parent=23 // pred_check_branch
          %208 = sbr.rel (%p206) target = $region28
        $region27: #{graphsage_forward.3} parent=23 // pred_region
          %s209 = sand.u32 %s45, 1
          %s210 = sand.u32 %s45, 1
          %s211 = smul.addr %s210, 64
          %s212 = scalar_lea.vmem [#allocation5], %s211
          %s213 = smul.u32 16, %s28
          %s214 = smul.addr %s213, 2
          %s215 = sadd.s32 %s29, %s214
          %s216 = smul.addr %s215, 4
          %s217 = scalar_lea.vmem %s1, %s216
          // Predicated region
          $region29: #{graphsage_forward.3} parent=27 // pred_check
            _
          $region30: #{graphsage_forward.3} parent=27 // pred_check_branch
            %219 = sbr.rel (0) target = $region32
          $region31: #{graphsage_forward.3} parent=27 // pred_region
            // Predicated region
            $region33: #{graphsage_forward.3} parent=31 // pred_check
              _
            $region34: #{graphsage_forward.3} parent=31 // pred_check_branch
              %221 = sbr.rel target = $region36
            $region35: #{graphsage_forward.3} parent=31 // pred_region
              // Predicated region
              $region48: #{graphsage_forward.3} parent=35 // pred_check
                _
              $region49: #{graphsage_forward.3} parent=35 // pred_check_branch
                %266 = sbr.rel (0) target = $region51
              $region50: #{graphsage_forward.3} parent=35 // pred_region
                loop: start=0, step=1, limit=1
                $region52: #{graphsage_forward.3} parent=50 // loop_pre_header
                  _
                $region53: #{graphsage_forward.3} parent=50 // loop_header
                  %s268 = sphi 0, %s272
                  %p269 = scmp.ge.s32.totalorder %s268, 1
                  %s273 = sphi %s217, %s217
                  %s274 = sphi %s212, %s212
                $region54: #{graphsage_forward.3} parent=50 // loop_header_branch
                  %271 = sbr.rel (%p269) target = $region58
                $region55: #{graphsage_forward.3} parent=50 // loop_body
                  _
                $region56: #{graphsage_forward.3} parent=50 // loop_footer
                  %s272 = sadd.s32 1, %s268
                $region57: #{graphsage_forward.3} parent=50 // loop_footer_branch
                  %267 = sbr.rel target = $region53
                $region58: #{graphsage_forward.3} parent=50 // loop_exit
                  _
                loop: start=0, step=1, limit=1
                $region59: #{graphsage_forward.3} parent=50 // loop_pre_header
                  _
                $region60: #{graphsage_forward.3} parent=50 // loop_header
                  %s277 = sphi 0, %s281
                  %p278 = scmp.ge.s32.totalorder %s277, 1
                  %s282 = sphi %s217, %s217
                  %s283 = sphi %s212, %s212
                $region61: #{graphsage_forward.3} parent=50 // loop_header_branch
                  %280 = sbr.rel (%p278) target = $region65
                $region62: #{graphsage_forward.3} parent=50 // loop_body
                  %v284 = vld [vmem:[%s282] sm:$0xf]
                  %285 = vst [vmem:[%s283] sm:$0xf] %v284
                  %v286 = vld [vmem:[%s282 + $0x8] sm:$0xf]
                  %287 = vst [vmem:[%s283 + $0x4] sm:$0xf] %v286
                  %v288 = vld [vmem:[%s282 + $0x10] sm:$0xf]
                  %289 = vst [vmem:[%s283 + $0x8] sm:$0xf] %v288
                  %v290 = vld [vmem:[%s282 + $0x18] sm:$0xf]
                  %291 = vst [vmem:[%s283 + $0xc] sm:$0xf] %v290
                  %v292 = vld [vmem:[%s282 + $0x20] sm:$0xf]
                  %293 = vst [vmem:[%s283 + $0x10] sm:$0xf] %v292
                  %v294 = vld [vmem:[%s282 + $0x28] sm:$0xf]
                  %295 = vst [vmem:[%s283 + $0x14] sm:$0xf] %v294
                  %v296 = vld [vmem:[%s282 + $0x30] sm:$0xf]
                  %297 = vst [vmem:[%s283 + $0x18] sm:$0xf] %v296
                  %v298 = vld [vmem:[%s282 + $0x38] sm:$0xf]
                  %299 = vst [vmem:[%s283 + $0x1c] sm:$0xf] %v298
                  %v300 = vld [vmem:[%s282 + $0x40] sm:$0xf]
                  %301 = vst [vmem:[%s283 + $0x20] sm:$0xf] %v300
                  %v302 = vld [vmem:[%s282 + $0x48] sm:$0xf]
                  %303 = vst [vmem:[%s283 + $0x24] sm:$0xf] %v302
                  %v304 = vld [vmem:[%s282 + $0x50] sm:$0xf]
                  %305 = vst [vmem:[%s283 + $0x28] sm:$0xf] %v304
                  %v306 = vld [vmem:[%s282 + $0x58] sm:$0xf]
                  %307 = vst [vmem:[%s283 + $0x2c] sm:$0xf] %v306
                  %v308 = vld [vmem:[%s282 + $0x60] sm:$0xf]
                  %309 = vst [vmem:[%s283 + $0x30] sm:$0xf] %v308
                  %v310 = vld [vmem:[%s282 + $0x68] sm:$0xf]
                  %311 = vst [vmem:[%s283 + $0x34] sm:$0xf] %v310
                  %v312 = vld [vmem:[%s282 + $0x70] sm:$0xf]
                  %313 = vst [vmem:[%s283 + $0x38] sm:$0xf] %v312
                  %v314 = vld [vmem:[%s282 + $0x78] sm:$0xf]
                  %315 = vst [vmem:[%s283 + $0x3c] sm:$0xf] %v314
                $region63: #{graphsage_forward.3} parent=50 // loop_footer
                  %s281 = sadd.s32 1, %s277
                $region64: #{graphsage_forward.3} parent=50 // loop_footer_branch
                  %276 = sbr.rel target = $region60
                $region65: #{graphsage_forward.3} parent=50 // loop_exit
                  _
              $region51: #{graphsage_forward.3} parent=35 // pred_fallthru
                _
            $region36: #{graphsage_forward.3} parent=31 // pred_fallthru
              _
            // Predicated region
            $region37: #{graphsage_forward.3} parent=31 // pred_check
              _
            $region38: #{graphsage_forward.3} parent=31 // pred_check_branch
              %223 = sbr.rel (0) target = $region40
            $region39: #{graphsage_forward.3} parent=31 // pred_region
              loop: start=0, step=1, limit=1
              $region41: #{graphsage_forward.3} parent=39 // loop_pre_header
                _
              $region42: #{graphsage_forward.3} parent=39 // loop_header
                %s226 = sphi 0, %s230
                %p227 = scmp.ge.s32.totalorder %s226, 1
                %s231 = sphi %s217, %s217
                %s232 = sphi %s212, %s212
              $region43: #{graphsage_forward.3} parent=39 // loop_header_branch
                %229 = sbr.rel (%p227) target = $region47
              $region44: #{graphsage_forward.3} parent=39 // loop_body
                %v233 = vld [vmem:[%s231] sm:$0xf]
                %234 = vst [vmem:[%s232] sm:$0xf] %v233
                %v235 = vld [vmem:[%s231 + $0x8] sm:$0xf]
                %236 = vst [vmem:[%s232 + $0x4] sm:$0xf] %v235
                %v237 = vld [vmem:[%s231 + $0x10] sm:$0xf]
                %238 = vst [vmem:[%s232 + $0x8] sm:$0xf] %v237
                %v239 = vld [vmem:[%s231 + $0x18] sm:$0xf]
                %240 = vst [vmem:[%s232 + $0xc] sm:$0xf] %v239
                %v241 = vld [vmem:[%s231 + $0x20] sm:$0xf]
                %242 = vst [vmem:[%s232 + $0x10] sm:$0xf] %v241
                %v243 = vld [vmem:[%s231 + $0x28] sm:$0xf]
                %244 = vst [vmem:[%s232 + $0x14] sm:$0xf] %v243
                %v245 = vld [vmem:[%s231 + $0x30] sm:$0xf]
                %246 = vst [vmem:[%s232 + $0x18] sm:$0xf] %v245
                %v247 = vld [vmem:[%s231 + $0x38] sm:$0xf]
                %248 = vst [vmem:[%s232 + $0x1c] sm:$0xf] %v247
                %v249 = vld [vmem:[%s231 + $0x40] sm:$0xf]
                %250 = vst [vmem:[%s232 + $0x20] sm:$0xf] %v249
                %v251 = vld [vmem:[%s231 + $0x48] sm:$0xf]
                %252 = vst [vmem:[%s232 + $0x24] sm:$0xf] %v251
                %v253 = vld [vmem:[%s231 + $0x50] sm:$0xf]
                %254 = vst [vmem:[%s232 + $0x28] sm:$0xf] %v253
                %v255 = vld [vmem:[%s231 + $0x58] sm:$0xf]
                %256 = vst [vmem:[%s232 + $0x2c] sm:$0xf] %v255
                %v257 = vld [vmem:[%s231 + $0x60] sm:$0xf]
                %258 = vst [vmem:[%s232 + $0x30] sm:$0xf] %v257
                %v259 = vld [vmem:[%s231 + $0x68] sm:$0xf]
                %260 = vst [vmem:[%s232 + $0x34] sm:$0xf] %v259
                %v261 = vld [vmem:[%s231 + $0x70] sm:$0xf]
                %262 = vst [vmem:[%s232 + $0x38] sm:$0xf] %v261
                %v263 = vld [vmem:[%s231 + $0x78] sm:$0xf]
                %264 = vst [vmem:[%s232 + $0x3c] sm:$0xf] %v263
              $region45: #{graphsage_forward.3} parent=39 // loop_footer
                %s230 = sadd.s32 1, %s226
              $region46: #{graphsage_forward.3} parent=39 // loop_footer_branch
                %225 = sbr.rel target = $region42
              $region47: #{graphsage_forward.3} parent=39 // loop_exit
                _
            $region40: #{graphsage_forward.3} parent=31 // pred_fallthru
              _
          $region32: #{graphsage_forward.3} parent=27 // pred_fallthru
            _
          %316 = vnop
        $region28: #{graphsage_forward.3} parent=23 // pred_fallthru
          _
        // Predicated region
        $region66: #{graphsage_forward.3} parent=23 // pred_check
          %p317 = pneg %p81
        $region67: #{graphsage_forward.3} parent=23 // pred_check_branch
          %319 = sbr.rel (%p317) target = $region69
        $region68: #{graphsage_forward.3} parent=23 // pred_region
          %s320 = smul.u32 16, %s29
          %p321 = scmp.lt.s32.totalorder %s320, 31
          %s322 = scalar_select %p321, %s320, 31
          %s323 = smul.addr %s322, 4
          %s324 = scalar_lea.vmem %s2, %s323
          %s325 = smul.u32 16, %s29
        $region69: #{graphsage_forward.3} parent=23 // pred_fallthru
          _
        // Predicated region
        $region70: #{graphsage_forward.3} parent=23 // pred_check
          %p326 = pneg %p107
        $region71: #{graphsage_forward.3} parent=23 // pred_check_branch
          %328 = sbr.rel (%p326) target = $region73
        $region72: #{graphsage_forward.3} parent=23 // pred_region
          %s329 = smul.u32 16, %s28
          %p330 = scmp.lt.s32.totalorder %s329, 31
          %s331 = scalar_select %p330, %s329, 31
          %s332 = smul.addr %s331, 4
          %s333 = scalar_lea.vmem %s3, %s332
          %s334 = smul.u32 16, %s28
        $region73: #{graphsage_forward.3} parent=23 // pred_fallthru
          _
      $region24: #{graphsage_forward.3} parent=5 // pred_fallthru
        _
      %p335 = scmp.le.s32.totalorder 1, %s21
      %p336 = scmp.lt.s32.totalorder %s21, 5
      %p337 = pnand %p335, %p336
      %p338 = pneg %p337
      // Predicated region
      $region74: #{graphsage_forward.3} parent=5 // pred_check
        _
      $region75: #{graphsage_forward.3} parent=5 // pred_check_branch
        %340 = sbr.rel (%p337) target = $region77
      $region76: #{graphsage_forward.3} parent=5 // pred_region
        %s341 = ssub.s32 %s21, 1
        %s342 = sand.u32 %s48, 1
        %s343 = sand.u32 %s48, 1
        %s344 = smul.addr %s343, 64
        %s345 = scalar_lea.vmem [#allocation5], %s344
        // Predicated region
        $region78: #{graphsage_forward.3} parent=76 // pred_check
          %p346 = pneg %p61
        $region79: #{graphsage_forward.3} parent=76 // pred_check_branch
          %348 = sbr.rel (%p346) target = $region81
        $region80: #{graphsage_forward.3} parent=76 // pred_region
          _
        $region81: #{graphsage_forward.3} parent=76 // pred_fallthru
          _
        %s349 = sand.u32 %s48, 1
        %s350 = sand.u32 %s48, 1
        %s351 = smul.addr %s350, 64
        %s352 = scalar_lea.vmem [#allocation5], %s351
        %p353 = pneg %p61
        %p354 = pneg %p58
        %s355 = smul.u32 16, %s31
        %p356 = scmp.lt.s32.totalorder %s355, 31
        %s357 = scalar_select %p356, %s355, 31
        %s358 = smul.addr %s357, 4
        %s359 = scalar_lea.vmem %s2, %s358
        %p360 = pneg %p87
        %p361 = pneg %p84
        %s362 = smul.u32 16, %s30
        %p363 = scmp.lt.s32.totalorder %s362, 31
        %s364 = scalar_select %p363, %s362, 31
        %s365 = smul.addr %s364, 4
        %s366 = scalar_lea.vmem %s3, %s365
        %p367 = pneg %p113
        %p368 = pneg %p110
        %p369 = pneg %p134
        %p370 = pneg %p131
        %p371 = pneg %p155
        %p372 = pneg %p152
        %p373 = pneg %p181
        %p374 = pneg %p178
        %s375 = sand.u32 %s168, 1
        %s376 = scalar_lea.sflag [#allocation7], %s375
        %s377 = sand.u32 %s168, 1
        %s378 = smul.addr %s377, 128
        %s379 = scalar_lea.vmem [#allocation6], %s378
        %s380 = smul.u32 16, %s30
        %s381 = smul.u32 16, %s31
        %p382 = scmp.lt.s32.totalorder %s381, 31
        %s383 = scalar_select %p382, %s381, 31
        %s384 = smul.addr %s383, 4
        %s385 = scalar_lea.vmem %s2, %s384
        %s386 = smul.u32 16, %s31
        %s387 = smul.u32 16, %s30
        %p388 = scmp.lt.s32.totalorder %s387, 31
        %s389 = scalar_select %p388, %s387, 31
        %s390 = smul.addr %s389, 4
        %s391 = scalar_lea.vmem %s3, %s390
        %s392 = smul.u32 16, %s30
        %s393 = smul.u32 16, %s30
        %p395 = scmp.eq.s32.totalorder %s31, 0
        // Predicated region
        $region82: #{graphsage_forward.3} parent=76 // pred_check
          %p396 = pneg %p395
        $region83: #{graphsage_forward.3} parent=76 // pred_check_branch
          %398 = sbr.rel (%p396) target = $region85
        $region84: #{graphsage_forward.3} parent=76 // pred_region
          %399 = vst [vmem:[#allocation2] sm:$0xff] 0.0
          %400 = vst [vmem:[#allocation2 + $0x8] sm:$0xff] 0.0
          %401 = vst [vmem:[#allocation2 + $0x10] sm:$0xff] 0.0
          %402 = vst [vmem:[#allocation2 + $0x18] sm:$0xff] 0.0
          %403 = vst [vmem:[#allocation2 + $0x20] sm:$0xff] 0.0
          %404 = vst [vmem:[#allocation2 + $0x28] sm:$0xff] 0.0
          %405 = vst [vmem:[#allocation2 + $0x30] sm:$0xff] 0.0
          %406 = vst [vmem:[#allocation2 + $0x38] sm:$0xff] 0.0
          %407 = vst [vmem:[#allocation2 + $0x40] sm:$0xff] 0.0
          %408 = vst [vmem:[#allocation2 + $0x48] sm:$0xff] 0.0
          %409 = vst [vmem:[#allocation2 + $0x50] sm:$0xff] 0.0
          %410 = vst [vmem:[#allocation2 + $0x58] sm:$0xff] 0.0
          %411 = vst [vmem:[#allocation2 + $0x60] sm:$0xff] 0.0
          %412 = vst [vmem:[#allocation2 + $0x68] sm:$0xff] 0.0
          %413 = vst [vmem:[#allocation2 + $0x70] sm:$0xff] 0.0
          %414 = vst [vmem:[#allocation2 + $0x78] sm:$0xff] 0.0
        $region85: #{graphsage_forward.3} parent=76 // pred_fallthru
          _
        %s415 = smul.u32 %s30, 2
        %s416 = sadd.s32 %s415, %s31
        %s417 = sld [smem:[#allocation4 + %s416]]
        %p418 = scmp.ne.s32.totalorder %s417, 0
        // Predicated region
        $region86: #{graphsage_forward.3} parent=76 // pred_check
          %p419 = pneg %p418
        $region87: #{graphsage_forward.3} parent=76 // pred_check_branch
          %421 = sbr.rel (%p419) target = $region89
        $region88: #{graphsage_forward.3} parent=76 // pred_region
          %v422 = vld [vmem:[#allocation2] sm:$0xff]
          %v423 = vld [vmem:[#allocation2 + $0x8] sm:$0xff]
          %v424 = vld [vmem:[#allocation2 + $0x10] sm:$0xff]
          %v425 = vld [vmem:[#allocation2 + $0x18] sm:$0xff]
          %v426 = vld [vmem:[#allocation2 + $0x20] sm:$0xff]
          %v427 = vld [vmem:[#allocation2 + $0x28] sm:$0xff]
          %v428 = vld [vmem:[#allocation2 + $0x30] sm:$0xff]
          %v429 = vld [vmem:[#allocation2 + $0x38] sm:$0xff]
          %v430 = vld [vmem:[#allocation2 + $0x40] sm:$0xff]
          %v431 = vld [vmem:[#allocation2 + $0x48] sm:$0xff]
          %v432 = vld [vmem:[#allocation2 + $0x50] sm:$0xff]
          %v433 = vld [vmem:[#allocation2 + $0x58] sm:$0xff]
          %v434 = vld [vmem:[#allocation2 + $0x60] sm:$0xff]
          %v435 = vld [vmem:[#allocation2 + $0x68] sm:$0xff]
          %v436 = vld [vmem:[#allocation2 + $0x70] sm:$0xff]
          %v437 = vld [vmem:[#allocation2 + $0x78] sm:$0xff]
          %v438 = vld [vmem:[%s345] sm:$0xf]
          %v439 = vld [vmem:[%s345 + $0x4] sm:$0xf]
          %v440 = vld [vmem:[%s345 + $0x8] sm:$0xf]
          %v441 = vld [vmem:[%s345 + $0xc] sm:$0xf]
          %v442 = vld [vmem:[%s345 + $0x10] sm:$0xf]
          %v443 = vld [vmem:[%s345 + $0x14] sm:$0xf]
          %v444 = vld [vmem:[%s345 + $0x18] sm:$0xf]
          %v445 = vld [vmem:[%s345 + $0x1c] sm:$0xf]
          %v446 = vld [vmem:[%s345 + $0x20] sm:$0xf]
          %v447 = vld [vmem:[%s345 + $0x24] sm:$0xf]
          %v448 = vld [vmem:[%s345 + $0x28] sm:$0xf]
          %v449 = vld [vmem:[%s345 + $0x2c] sm:$0xf]
          %v450 = vld [vmem:[%s345 + $0x30] sm:$0xf]
          %v451 = vld [vmem:[%s345 + $0x34] sm:$0xf]
          %v452 = vld [vmem:[%s345 + $0x38] sm:$0xf]
          %v453 = vld [vmem:[%s345 + $0x3c] sm:$0xf]
          %v454 = vld [vmem:[%s385] sm:$0xf]
          %v455 = vld [vmem:[%s385 + $0x4] sm:$0xf]
          %v456 = vld [vmem:[%s385 + $0x8] sm:$0xf]
          %v457 = vld [vmem:[%s385 + $0xc] sm:$0xf]
          %v458 = vld [vmem:[%s385 + $0x10] sm:$0xf]
          %v459 = vld [vmem:[%s385 + $0x14] sm:$0xf]
          %v460 = vld [vmem:[%s385 + $0x18] sm:$0xf]
          %v461 = vld [vmem:[%s385 + $0x1c] sm:$0xf]
          %v462 = vld [vmem:[%s385 + $0x20] sm:$0xf]
          %v463 = vld [vmem:[%s385 + $0x24] sm:$0xf]
          %v464 = vld [vmem:[%s385 + $0x28] sm:$0xf]
          %v465 = vld [vmem:[%s385 + $0x2c] sm:$0xf]
          %v466 = vld [vmem:[%s385 + $0x30] sm:$0xf]
          %v467 = vld [vmem:[%s385 + $0x34] sm:$0xf]
          %v468 = vld [vmem:[%s385 + $0x38] sm:$0xf]
          %v469 = vld [vmem:[%s385 + $0x3c] sm:$0xf]
          %v486 = vunpack.c.l.b16 %v438
          %v487 = vunpack.c.l.b16 %v439
          %v488 = vunpack.c.l.b16 %v440
          %v489 = vunpack.c.l.b16 %v441
          %v490 = vunpack.c.l.b16 %v442
          %v491 = vunpack.c.l.b16 %v443
          %v492 = vunpack.c.l.b16 %v444
          %v493 = vunpack.c.l.b16 %v445
          %v494 = vunpack.c.l.b16 %v446
          %v495 = vunpack.c.l.b16 %v447
          %v496 = vunpack.c.l.b16 %v448
          %v497 = vunpack.c.l.b16 %v449
          %v498 = vunpack.c.l.b16 %v450
          %v499 = vunpack.c.l.b16 %v451
          %v500 = vunpack.c.l.b16 %v452
          %v501 = vunpack.c.l.b16 %v453
          %v502 = vpack.c.b16 %v487, %v486
          %v503 = vpack.c.b16 %v489, %v488
          %v504 = vpack.c.b16 %v491, %v490
          %v505 = vpack.c.b16 %v493, %v492
          %v506 = vpack.c.b16 %v495, %v494
          %v507 = vpack.c.b16 %v497, %v496
          %v508 = vpack.c.b16 %v499, %v498
          %v509 = vpack.c.b16 %v501, %v500
          %v534 = vunpack.c.l.b16 %v454
          %v535 = vunpack.c.l.b16 %v455
          %v536 = vunpack.c.l.b16 %v456
          %v537 = vunpack.c.l.b16 %v457
          %v538 = vunpack.c.l.b16 %v458
          %v539 = vunpack.c.l.b16 %v459
          %v540 = vunpack.c.l.b16 %v460
          %v541 = vunpack.c.l.b16 %v461
          %v542 = vunpack.c.l.b16 %v462
          %v543 = vunpack.c.l.b16 %v463
          %v544 = vunpack.c.l.b16 %v464
          %v545 = vunpack.c.l.b16 %v465
          %v546 = vunpack.c.l.b16 %v466
          %v547 = vunpack.c.l.b16 %v467
          %v548 = vunpack.c.l.b16 %v468
          %v549 = vunpack.c.l.b16 %v469
          %v550 = vpack.c.b16 %v535, %v534
          %v551 = vpack.c.b16 %v537, %v536
          %v552 = vpack.c.b16 %v539, %v538
          %v553 = vpack.c.b16 %v541, %v540
          %v554 = vpack.c.b16 %v543, %v542
          %v555 = vpack.c.b16 %v545, %v544
          %v556 = vpack.c.b16 %v547, %v546
          %v557 = vpack.c.b16 %v549, %v548
          %566 = vmatprep.subr.bf16.mxu0 0
          %567 = vmatpush1.bf16.msra.mxu0 %v550
          %568 = vmatprep.subr.bf16.mxu0 0
          %569 = vmatpush1.bf16.msra.mxu0 %v551
          %570 = vmatprep.subr.bf16.mxu0 0
          %571 = vmatpush1.bf16.msra.mxu0 %v552
          %572 = vmatprep.subr.bf16.mxu0 0
          %573 = vmatpush1.bf16.msra.mxu0 %v553
          %574 = vmatprep.subr.bf16.mxu0 0
          %575 = vmatpush1.bf16.msra.mxu0 %v554
          %576 = vmatprep.subr.bf16.mxu0 0
          %577 = vmatpush1.bf16.msra.mxu0 %v555
          %578 = vmatprep.subr.bf16.mxu0 0
          %579 = vmatpush1.bf16.msra.mxu0 %v556
          %580 = vmatprep.subr.bf16.mxu0 0
          %581 = vmatpush1.bf16.msra.mxu0 %v557
          %582 = vmatprep.subr.bf16.mxu0 0
          %583 = vmatpush1.bf16.msra.mxu0 0
          %584 = vmatprep.subr.bf16.mxu0 0
          %585 = vmatpush1.bf16.msra.mxu0 0
          %586 = vmatprep.subr.bf16.mxu0 0
          %587 = vmatpush1.bf16.msra.mxu0 0
          %588 = vmatprep.subr.bf16.mxu0 0
          %589 = vmatpush1.bf16.msra.mxu0 0
          %590 = vmatprep.subr.bf16.mxu0 0
          %591 = vmatpush1.bf16.msra.mxu0 0
          %592 = vmatprep.subr.bf16.mxu0 0
          %593 = vmatpush1.bf16.msra.mxu0 0
          %594 = vmatprep.subr.bf16.mxu0 0
          %595 = vmatpush1.bf16.msra.mxu0 0
          %596 = vmatprep.subr.bf16.mxu0 0
          %597 = vmatpush1.bf16.msra.mxu0 0
          %598 = vmatprep.mubr.bf16.mxu0 0
          %599 = vmatmul.mubr.bf16.gmra.mrb[0].mxu0 %v502
          %v600 = vpop.f32.mrb[0].mxu0
          %v601 = vadd.f32 0.0, %v600
          %v602 = vpop.f32.mrb[0].mxu0
          %v603 = vpop.f32.mrb[0].mxu0
          %v604 = vadd.f32 0.0, %v603
          %v605 = vpop.f32.mrb[0].mxu0
          %606 = vmatprep.mubr.bf16.mxu0 0
          %607 = vmatmul.mubr.bf16.gmra.mrb[0].mxu0 %v503
          %v608 = vpop.f32.mrb[0].mxu0
          %v609 = vadd.f32 0.0, %v608
          %v610 = vpop.f32.mrb[0].mxu0
          %v611 = vpop.f32.mrb[0].mxu0
          %v612 = vadd.f32 0.0, %v611
          %v613 = vpop.f32.mrb[0].mxu0
          %614 = vmatprep.mubr.bf16.mxu0 0
          %615 = vmatmul.mubr.bf16.gmra.mrb[0].mxu0 %v504
          %v616 = vpop.f32.mrb[0].mxu0
          %v617 = vadd.f32 0.0, %v616
          %v618 = vpop.f32.mrb[0].mxu0
          %v619 = vpop.f32.mrb[0].mxu0
          %v620 = vadd.f32 0.0, %v619
          %v621 = vpop.f32.mrb[0].mxu0
          %622 = vmatprep.mubr.bf16.mxu0 0
          %623 = vmatmul.mubr.bf16.gmra.mrb[0].mxu0 %v505
          %v624 = vpop.f32.mrb[0].mxu0
          %v625 = vadd.f32 0.0, %v624
          %v626 = vpop.f32.mrb[0].mxu0
          %v627 = vpop.f32.mrb[0].mxu0
          %v628 = vadd.f32 0.0, %v627
          %v629 = vpop.f32.mrb[0].mxu0
          %630 = vmatprep.mubr.bf16.mxu0 0
          %631 = vmatmul.mubr.bf16.gmra.mrb[0].mxu0 %v506
          %v632 = vpop.f32.mrb[0].mxu0
          %v633 = vadd.f32 0.0, %v632
          %v634 = vpop.f32.mrb[0].mxu0
          %v635 = vpop.f32.mrb[0].mxu0
          %v636 = vadd.f32 0.0, %v635
          %v637 = vpop.f32.mrb[0].mxu0
          %638 = vmatprep.mubr.bf16.mxu0 0
          %639 = vmatmul.mubr.bf16.gmra.mrb[0].mxu0 %v507
          %v640 = vpop.f32.mrb[0].mxu0
          %v641 = vadd.f32 0.0, %v640
          %v642 = vpop.f32.mrb[0].mxu0
          %v643 = vpop.f32.mrb[0].mxu0
          %v644 = vadd.f32 0.0, %v643
          %v645 = vpop.f32.mrb[0].mxu0
          %646 = vmatprep.mubr.bf16.mxu0 0
          %647 = vmatmul.mubr.bf16.gmra.mrb[0].mxu0 %v508
          %v648 = vpop.f32.mrb[0].mxu0
          %v649 = vadd.f32 0.0, %v648
          %v650 = vpop.f32.mrb[0].mxu0
          %v651 = vpop.f32.mrb[0].mxu0
          %v652 = vadd.f32 0.0, %v651
          %v653 = vpop.f32.mrb[0].mxu0
          %654 = vmatprep.mubr.bf16.mxu0 0
          %655 = vmatmul.mubr.bf16.gmra.mrb[0].mxu0 %v509
          %v656 = vpop.f32.mrb[0].mxu0
          %v657 = vadd.f32 0.0, %v656
          %v658 = vpop.f32.mrb[0].mxu0
          %v659 = vpop.f32.mrb[0].mxu0
          %v660 = vadd.f32 0.0, %v659
          %v661 = vpop.f32.mrb[0].mxu0
          %662 = vdwg.mxu0
          %v663 = vadd.f32 %v422, %v601
          %v664 = vadd.f32 %v423, %v604
          %v665 = vadd.f32 %v424, %v609
          %v666 = vadd.f32 %v425, %v612
          %v667 = vadd.f32 %v426, %v617
          %v668 = vadd.f32 %v427, %v620
          %v669 = vadd.f32 %v428, %v625
          %v670 = vadd.f32 %v429, %v628
          %v671 = vadd.f32 %v430, %v633
          %v672 = vadd.f32 %v431, %v636
          %v673 = vadd.f32 %v432, %v641
          %v674 = vadd.f32 %v433, %v644
          %v675 = vadd.f32 %v434, %v649
          %v676 = vadd.f32 %v435, %v652
          %v677 = vadd.f32 %v436, %v657
          %v678 = vadd.f32 %v437, %v660
          %679 = vst [vmem:[#allocation2] sm:$0xff] %v663
          %680 = vst [vmem:[#allocation2 + $0x8] sm:$0xff] %v664
          %681 = vst [vmem:[#allocation2 + $0x10] sm:$0xff] %v665
          %682 = vst [vmem:[#allocation2 + $0x18] sm:$0xff] %v666
          %683 = vst [vmem:[#allocation2 + $0x20] sm:$0xff] %v667
          %684 = vst [vmem:[#allocation2 + $0x28] sm:$0xff] %v668
          %685 = vst [vmem:[#allocation2 + $0x30] sm:$0xff] %v669
          %686 = vst [vmem:[#allocation2 + $0x38] sm:$0xff] %v670
          %687 = vst [vmem:[#allocation2 + $0x40] sm:$0xff] %v671
          %688 = vst [vmem:[#allocation2 + $0x48] sm:$0xff] %v672
          %689 = vst [vmem:[#allocation2 + $0x50] sm:$0xff] %v673
          %690 = vst [vmem:[#allocation2 + $0x58] sm:$0xff] %v674
          %691 = vst [vmem:[#allocation2 + $0x60] sm:$0xff] %v675
          %692 = vst [vmem:[#allocation2 + $0x68] sm:$0xff] %v676
          %693 = vst [vmem:[#allocation2 + $0x70] sm:$0xff] %v677
          %694 = vst [vmem:[#allocation2 + $0x78] sm:$0xff] %v678
        $region89: #{graphsage_forward.3} parent=76 // pred_fallthru
          _
        %p695 = scmp.eq.s32.totalorder %s31, 1
        // Predicated region
        $region90: #{graphsage_forward.3} parent=76 // pred_check
          %p696 = pneg %p695
        $region91: #{graphsage_forward.3} parent=76 // pred_check_branch
          %698 = sbr.rel (%p696) target = $region93
        $region92: #{graphsage_forward.3} parent=76 // pred_region
          %v699 = vld [vmem:[%s391] sm:$0xf]
          %v700 = vld [vmem:[%s391 + $0x4] sm:$0xf]
          %v701 = vld [vmem:[%s391 + $0x8] sm:$0xf]
          %v702 = vld [vmem:[%s391 + $0xc] sm:$0xf]
          %v703 = vld [vmem:[%s391 + $0x10] sm:$0xf]
          %v704 = vld [vmem:[%s391 + $0x14] sm:$0xf]
          %v705 = vld [vmem:[%s391 + $0x18] sm:$0xf]
          %v706 = vld [vmem:[%s391 + $0x1c] sm:$0xf]
          %v707 = vld [vmem:[%s391 + $0x20] sm:$0xf]
          %v708 = vld [vmem:[%s391 + $0x24] sm:$0xf]
          %v709 = vld [vmem:[%s391 + $0x28] sm:$0xf]
          %v710 = vld [vmem:[%s391 + $0x2c] sm:$0xf]
          %v711 = vld [vmem:[%s391 + $0x30] sm:$0xf]
          %v712 = vld [vmem:[%s391 + $0x34] sm:$0xf]
          %v713 = vld [vmem:[%s391 + $0x38] sm:$0xf]
          %v714 = vld [vmem:[%s391 + $0x3c] sm:$0xf]
          %v715 = vld [vmem:[#allocation2] sm:$0xff]
          %v716 = vld [vmem:[#allocation2 + $0x8] sm:$0xff]
          %v717 = vld [vmem:[#allocation2 + $0x10] sm:$0xff]
          %v718 = vld [vmem:[#allocation2 + $0x18] sm:$0xff]
          %v719 = vld [vmem:[#allocation2 + $0x20] sm:$0xff]
          %v720 = vld [vmem:[#allocation2 + $0x28] sm:$0xff]
          %v721 = vld [vmem:[#allocation2 + $0x30] sm:$0xff]
          %v722 = vld [vmem:[#allocation2 + $0x38] sm:$0xff]
          %v723 = vld [vmem:[#allocation2 + $0x40] sm:$0xff]
          %v724 = vld [vmem:[#allocation2 + $0x48] sm:$0xff]
          %v725 = vld [vmem:[#allocation2 + $0x50] sm:$0xff]
          %v726 = vld [vmem:[#allocation2 + $0x58] sm:$0xff]
          %v727 = vld [vmem:[#allocation2 + $0x60] sm:$0xff]
          %v728 = vld [vmem:[#allocation2 + $0x68] sm:$0xff]
          %v729 = vld [vmem:[#allocation2 + $0x70] sm:$0xff]
          %v730 = vld [vmem:[#allocation2 + $0x78] sm:$0xff]
          %v731 = vpack.c.bf16 %v716, %v715
          %v732 = vpack.c.bf16 %v718, %v717
          %v733 = vpack.c.bf16 %v720, %v719
          %v734 = vpack.c.bf16 %v722, %v721
          %v735 = vpack.c.bf16 %v724, %v723
          %v736 = vpack.c.bf16 %v726, %v725
          %v737 = vpack.c.bf16 %v728, %v727
          %v738 = vpack.c.bf16 %v730, %v729
          %v755 = vunpack.c.l.b16 %v699
          %v756 = vunpack.c.l.b16 %v700
          %v757 = vunpack.c.l.b16 %v701
          %v758 = vunpack.c.l.b16 %v702
          %v759 = vunpack.c.l.b16 %v703
          %v760 = vunpack.c.l.b16 %v704
          %v761 = vunpack.c.l.b16 %v705
          %v762 = vunpack.c.l.b16 %v706
          %v763 = vunpack.c.l.b16 %v707
          %v764 = vunpack.c.l.b16 %v708
          %v765 = vunpack.c.l.b16 %v709
          %v766 = vunpack.c.l.b16 %v710
          %v767 = vunpack.c.l.b16 %v711
          %v768 = vunpack.c.l.b16 %v712
          %v769 = vunpack.c.l.b16 %v713
          %v770 = vunpack.c.l.b16 %v714
          %v771 = vpack.c.b16 %v756, %v755
          %v772 = vpack.c.b16 %v758, %v757
          %v773 = vpack.c.b16 %v760, %v759
          %v774 = vpack.c.b16 %v762, %v761
          %v775 = vpack.c.b16 %v764, %v763
          %v776 = vpack.c.b16 %v766, %v765
          %v777 = vpack.c.b16 %v768, %v767
          %v778 = vpack.c.b16 %v770, %v769
          %v787 = vld [vmem:[%s4] sm:$0xf]
          %v788 = vld [vmem:[%s4 + $0x4] sm:$0xf]
          %v789 = vld [vmem:[%s4 + $0x8] sm:$0xf]
          %v790 = vld [vmem:[%s4 + $0xc] sm:$0xf]
          %v791 = vld [vmem:[%s4 + $0x10] sm:$0xf]
          %v792 = vld [vmem:[%s4 + $0x14] sm:$0xf]
          %v793 = vld [vmem:[%s4 + $0x18] sm:$0xf]
          %v794 = vld [vmem:[%s4 + $0x1c] sm:$0xf]
          %v795 = vld [vmem:[%s4 + $0x20] sm:$0xf]
          %v796 = vld [vmem:[%s4 + $0x24] sm:$0xf]
          %v797 = vld [vmem:[%s4 + $0x28] sm:$0xf]
          %v798 = vld [vmem:[%s4 + $0x2c] sm:$0xf]
          %v799 = vld [vmem:[%s4 + $0x30] sm:$0xf]
          %v800 = vld [vmem:[%s4 + $0x34] sm:$0xf]
          %v801 = vld [vmem:[%s4 + $0x38] sm:$0xf]
          %v802 = vld [vmem:[%s4 + $0x3c] sm:$0xf]
          %v803 = vld [vmem:[%s4 + $0x40] sm:$0xf]
          %v804 = vld [vmem:[%s4 + $0x44] sm:$0xf]
          %v805 = vld [vmem:[%s4 + $0x48] sm:$0xf]
          %v806 = vld [vmem:[%s4 + $0x4c] sm:$0xf]
          %v807 = vld [vmem:[%s4 + $0x50] sm:$0xf]
          %v808 = vld [vmem:[%s4 + $0x54] sm:$0xf]
          %v809 = vld [vmem:[%s4 + $0x58] sm:$0xf]
          %v810 = vld [vmem:[%s4 + $0x5c] sm:$0xf]
          %v811 = vld [vmem:[%s4 + $0x60] sm:$0xf]
          %v812 = vld [vmem:[%s4 + $0x64] sm:$0xf]
          %v813 = vld [vmem:[%s4 + $0x68] sm:$0xf]
          %v814 = vld [vmem:[%s4 + $0x6c] sm:$0xf]
          %v815 = vld [vmem:[%s4 + $0x70] sm:$0xf]
          %v816 = vld [vmem:[%s4 + $0x74] sm:$0xf]
          %v817 = vld [vmem:[%s4 + $0x78] sm:$0xf]
          %v818 = vld [vmem:[%s4 + $0x7c] sm:$0xf]
          %v819 = vld [vmem:[%s5] sm:$0x1]
          %v821 = vlaneseq
          %v822 = vshrl.u32 %v821, 7
          %v823 = vsub.s32 0, %v822
          %v824 = vrot.slane %v819, %v823
          %v858 = vunpack.c.l.b16 %v787
          %v859 = vunpack.c.l.b16 %v788
          %v860 = vunpack.c.l.b16 %v789
          %v861 = vunpack.c.l.b16 %v790
          %v862 = vunpack.c.l.b16 %v791
          %v863 = vunpack.c.l.b16 %v792
          %v864 = vunpack.c.l.b16 %v793
          %v865 = vunpack.c.l.b16 %v794
          %v866 = vunpack.c.l.b16 %v795
          %v867 = vunpack.c.l.b16 %v796
          %v868 = vunpack.c.l.b16 %v797
          %v869 = vunpack.c.l.b16 %v798
          %v870 = vunpack.c.l.b16 %v799
          %v871 = vunpack.c.l.b16 %v800
          %v872 = vunpack.c.l.b16 %v801
          %v873 = vunpack.c.l.b16 %v802
          %v874 = vunpack.c.l.b16 %v803
          %v875 = vunpack.c.l.b16 %v804
          %v876 = vunpack.c.l.b16 %v805
          %v877 = vunpack.c.l.b16 %v806
          %v878 = vunpack.c.l.b16 %v807
          %v879 = vunpack.c.l.b16 %v808
          %v880 = vunpack.c.l.b16 %v809
          %v881 = vunpack.c.l.b16 %v810
          %v882 = vunpack.c.l.b16 %v811
          %v883 = vunpack.c.l.b16 %v812
          %v884 = vunpack.c.l.b16 %v813
          %v885 = vunpack.c.l.b16 %v814
          %v886 = vunpack.c.l.b16 %v815
          %v887 = vunpack.c.l.b16 %v816
          %v888 = vunpack.c.l.b16 %v817
          %v889 = vunpack.c.l.b16 %v818
          %v890 = vpack.c.b16 %v859, %v858
          %v891 = vpack.c.b16 %v861, %v860
          %v892 = vpack.c.b16 %v863, %v862
          %v893 = vpack.c.b16 %v865, %v864
          %v894 = vpack.c.b16 %v867, %v866
          %v895 = vpack.c.b16 %v869, %v868
          %v896 = vpack.c.b16 %v871, %v870
          %v897 = vpack.c.b16 %v873, %v872
          %v898 = vpack.c.b16 %v875, %v874
          %v899 = vpack.c.b16 %v877, %v876
          %v900 = vpack.c.b16 %v879, %v878
          %v901 = vpack.c.b16 %v881, %v880
          %v902 = vpack.c.b16 %v883, %v882
          %v903 = vpack.c.b16 %v885, %v884
          %v904 = vpack.c.b16 %v887, %v886
          %v905 = vpack.c.b16 %v889, %v888
          %922 = vmatprep.subr.bf16.mxu0 0
          %923 = vmatpush1.bf16.msra.mxu0 %v890
          %924 = vmatprep.subr.bf16.mxu0 0
          %925 = vmatpush1.bf16.msra.mxu0 %v891
          %926 = vmatprep.subr.bf16.mxu0 0
          %927 = vmatpush1.bf16.msra.mxu0 %v892
          %928 = vmatprep.subr.bf16.mxu0 0
          %929 = vmatpush1.bf16.msra.mxu0 %v893
          %930 = vmatprep.subr.bf16.mxu0 0
          %931 = vmatpush1.bf16.msra.mxu0 %v894
          %932 = vmatprep.subr.bf16.mxu0 0
          %933 = vmatpush1.bf16.msra.mxu0 %v895
          %934 = vmatprep.subr.bf16.mxu0 0
          %935 = vmatpush1.bf16.msra.mxu0 %v896
          %936 = vmatprep.subr.bf16.mxu0 0
          %937 = vmatpush1.bf16.msra.mxu0 %v897
          %938 = vmatprep.subr.bf16.mxu0 0
          %939 = vmatpush1.bf16.msra.mxu0 %v898
          %940 = vmatprep.subr.bf16.mxu0 0
          %941 = vmatpush1.bf16.msra.mxu0 %v899
          %942 = vmatprep.subr.bf16.mxu0 0
          %943 = vmatpush1.bf16.msra.mxu0 %v900
          %944 = vmatprep.subr.bf16.mxu0 0
          %945 = vmatpush1.bf16.msra.mxu0 %v901
          %946 = vmatprep.subr.bf16.mxu0 0
          %947 = vmatpush1.bf16.msra.mxu0 %v902
          %948 = vmatprep.subr.bf16.mxu0 0
          %949 = vmatpush1.bf16.msra.mxu0 %v903
          %950 = vmatprep.subr.bf16.mxu0 0
          %951 = vmatpush1.bf16.msra.mxu0 %v904
          %952 = vmatprep.subr.bf16.mxu0 0
          %953 = vmatpush1.bf16.msra.mxu0 %v905
          %954 = vmatprep.mubr.bf16.mxu0 %v731
          %955 = vmatmul.mubr.bf16.gmra.mrb[0].mxu0 %v771
          %v956 = vpop.f32.mrb[0].mxu0
          %v957 = vadd.f32 %v824, %v956
          %v958 = vpop.f32.mrb[0].mxu0
          %v959 = vpop.f32.mrb[0].mxu0
          %v960 = vadd.f32 %v824, %v959
          %v961 = vpop.f32.mrb[0].mxu0
          %962 = vmatprep.mubr.bf16.mxu0 %v732
          %963 = vmatmul.mubr.bf16.gmra.mrb[0].mxu0 %v772
          %v964 = vpop.f32.mrb[0].mxu0
          %v965 = vadd.f32 %v824, %v964
          %v966 = vpop.f32.mrb[0].mxu0
          %v967 = vpop.f32.mrb[0].mxu0
          %v968 = vadd.f32 %v824, %v967
          %v969 = vpop.f32.mrb[0].mxu0
          %970 = vmatprep.mubr.bf16.mxu0 %v733
          %971 = vmatmul.mubr.bf16.gmra.mrb[0].mxu0 %v773
          %v972 = vpop.f32.mrb[0].mxu0
          %v973 = vadd.f32 %v824, %v972
          %v974 = vpop.f32.mrb[0].mxu0
          %v975 = vpop.f32.mrb[0].mxu0
          %v976 = vadd.f32 %v824, %v975
          %v977 = vpop.f32.mrb[0].mxu0
          %978 = vmatprep.mubr.bf16.mxu0 %v734
          %979 = vmatmul.mubr.bf16.gmra.mrb[0].mxu0 %v774
          %v980 = vpop.f32.mrb[0].mxu0
          %v981 = vadd.f32 %v824, %v980
          %v982 = vpop.f32.mrb[0].mxu0
          %v983 = vpop.f32.mrb[0].mxu0
          %v984 = vadd.f32 %v824, %v983
          %v985 = vpop.f32.mrb[0].mxu0
          %986 = vmatprep.mubr.bf16.mxu0 %v735
          %987 = vmatmul.mubr.bf16.gmra.mrb[0].mxu0 %v775
          %v988 = vpop.f32.mrb[0].mxu0
          %v989 = vadd.f32 %v824, %v988
          %v990 = vpop.f32.mrb[0].mxu0
          %v991 = vpop.f32.mrb[0].mxu0
          %v992 = vadd.f32 %v824, %v991
          %v993 = vpop.f32.mrb[0].mxu0
          %994 = vmatprep.mubr.bf16.mxu0 %v736
          %995 = vmatmul.mubr.bf16.gmra.mrb[0].mxu0 %v776
          %v996 = vpop.f32.mrb[0].mxu0
          %v997 = vadd.f32 %v824, %v996
          %v998 = vpop.f32.mrb[0].mxu0
          %v999 = vpop.f32.mrb[0].mxu0
          %v1000 = vadd.f32 %v824, %v999
          %v1001 = vpop.f32.mrb[0].mxu0
          %1002 = vmatprep.mubr.bf16.mxu0 %v737
          %1003 = vmatmul.mubr.bf16.gmra.mrb[0].mxu0 %v777
          %v1004 = vpop.f32.mrb[0].mxu0
          %v1005 = vadd.f32 %v824, %v1004
          %v1006 = vpop.f32.mrb[0].mxu0
          %v1007 = vpop.f32.mrb[0].mxu0
          %v1008 = vadd.f32 %v824, %v1007
          %v1009 = vpop.f32.mrb[0].mxu0
          %1010 = vmatprep.mubr.bf16.mxu0 %v738
          %1011 = vmatmul.mubr.bf16.gmra.mrb[0].mxu0 %v778
          %v1012 = vpop.f32.mrb[0].mxu0
          %v1013 = vadd.f32 %v824, %v1012
          %v1014 = vpop.f32.mrb[0].mxu0
          %v1015 = vpop.f32.mrb[0].mxu0
          %v1016 = vadd.f32 %v824, %v1015
          %v1017 = vpop.f32.mrb[0].mxu0
          %1018 = vdwg.mxu0
          %v1019 = vmax.f32 %v957, 0.0
          %v1020 = vmax.f32 %v960, 0.0
          %v1021 = vmax.f32 %v965, 0.0
          %v1022 = vmax.f32 %v968, 0.0
          %v1023 = vmax.f32 %v973, 0.0
          %v1024 = vmax.f32 %v976, 0.0
          %v1025 = vmax.f32 %v981, 0.0
          %v1026 = vmax.f32 %v984, 0.0
          %v1027 = vmax.f32 %v989, 0.0
          %v1028 = vmax.f32 %v992, 0.0
          %v1029 = vmax.f32 %v997, 0.0
          %v1030 = vmax.f32 %v1000, 0.0
          %v1031 = vmax.f32 %v1005, 0.0
          %v1032 = vmax.f32 %v1008, 0.0
          %v1033 = vmax.f32 %v1013, 0.0
          %v1034 = vmax.f32 %v1016, 0.0
          %1035 = vst [vmem:[%s379] sm:$0xff] %v1019
          %1036 = vst [vmem:[%s379 + $0x8] sm:$0xff] %v1020
          %1037 = vst [vmem:[%s379 + $0x10] sm:$0xff] %v1021
          %1038 = vst [vmem:[%s379 + $0x18] sm:$0xff] %v1022
          %1039 = vst [vmem:[%s379 + $0x20] sm:$0xff] %v1023
          %1040 = vst [vmem:[%s379 + $0x28] sm:$0xff] %v1024
          %1041 = vst [vmem:[%s379 + $0x30] sm:$0xff] %v1025
          %1042 = vst [vmem:[%s379 + $0x38] sm:$0xff] %v1026
          %1043 = vst [vmem:[%s379 + $0x40] sm:$0xff] %v1027
          %1044 = vst [vmem:[%s379 + $0x48] sm:$0xff] %v1028
          %1045 = vst [vmem:[%s379 + $0x50] sm:$0xff] %v1029
          %1046 = vst [vmem:[%s379 + $0x58] sm:$0xff] %v1030
          %1047 = vst [vmem:[%s379 + $0x60] sm:$0xff] %v1031
          %1048 = vst [vmem:[%s379 + $0x68] sm:$0xff] %v1032
          %1049 = vst [vmem:[%s379 + $0x70] sm:$0xff] %v1033
          %1050 = vst [vmem:[%s379 + $0x78] sm:$0xff] %v1034
        $region93: #{graphsage_forward.3} parent=76 // pred_fallthru
          _
        %s1051 = sand.u32 %s168, 1
        %s1052 = scalar_lea.sflag [#allocation7], %s1051
        %s1053 = sand.u32 %s168, 1
        %s1054 = smul.addr %s1053, 128
        %s1055 = scalar_lea.vmem [#allocation6], %s1054
        // Predicated region
        $region94: #{graphsage_forward.3} parent=76 // pred_check
          %p1056 = pneg %p178
        $region95: #{graphsage_forward.3} parent=76 // pred_check_branch
          %1058 = sbr.rel (%p1056) target = $region97
        $region96: #{graphsage_forward.3} parent=76 // pred_region
          %s1059 = smul.u32 16, %s30
          %s1061 = ssub.s32 2048, 2048
          %1062 = vsyncadd %s1052, %s1061
          %s1063 = smul.addr %s1059, 128
          %s1064 = scalar_lea.hbm %s6, %s1063
          %s1065 = sshll.u32 %s1055, 4
          %s1066 = int_to_ptr.vmem [resolvable:$true] %s1065
          %1071 = dma.vmem_to_hbm [thread:$0]  %s1066, 2048, %s1064, %s1052, 128, 128, 8
        $region97: #{graphsage_forward.3} parent=76 // pred_fallthru
          _
      $region77: #{graphsage_forward.3} parent=5 // pred_fallthru
        _
      %p1072 = scmp.le.s32.totalorder 2, %s21
      // Predicated region
      $region98: #{graphsage_forward.3} parent=5 // pred_check
        %p1073 = pneg %p1072
      $region99: #{graphsage_forward.3} parent=5 // pred_check_branch
        %1075 = sbr.rel (%p1073) target = $region101
      $region100: #{graphsage_forward.3} parent=5 // pred_region
        %s1076 = ssub.s32 %s21, 2
        // Predicated region
        $region102: #{graphsage_forward.3} parent=100 // pred_check
          %p1077 = pneg %p184
        $region103: #{graphsage_forward.3} parent=100 // pred_check_branch
          %1079 = sbr.rel (%p1077) target = $region105
        $region104: #{graphsage_forward.3} parent=100 // pred_region
          %s1080 = sand.u32 %s169, 1
          %s1081 = scalar_lea.sflag [#allocation7], %s1080
          %s1082 = sand.u32 %s169, 1
          %s1083 = smul.addr %s1082, 128
          %s1084 = scalar_lea.vmem [#allocation6], %s1083
          %1085 = dma.done %s1081, 2048
        $region105: #{graphsage_forward.3} parent=100 // pred_fallthru
          _
      $region101: #{graphsage_forward.3} parent=5 // pred_fallthru
        _
    $region6: #{graphsage_forward.3} parent=1 // loop_footer
      %s25 = sadd.s32 1, %s21
    $region7: #{graphsage_forward.3} parent=1 // loop_footer_branch
      %20 = sbr.rel target = $region3
    $region8: #{graphsage_forward.3} parent=1 // loop_exit
      _
    %1086 = vsyncpa [#allocation7], 1
    %s1087 = scalar_lea.sflag [#allocation7], 1
    %1088 = vsyncpa %s1087, 1

</llo_original>
